<compile_context>
chip_gen: v7x
topology: tpu7x:2x2x1
jax: 0.10.0
libtpu: 0.0.40
codegen_flags: <defaults>
</compile_context>

<pallas_src>
import functools

import jax
import jax.numpy as jnp
from jax.experimental import pallas as pl
from jax.experimental.pallas import tpu as pltpu


# ----------------------------------------------------------------------------
# Fused GRUNet kernel: all layers + fc head, time loop inside the kernel.
# ----------------------------------------------------------------------------
def _make_grunet_kernel(n_layers, T, Bp, H):
    H3 = 3 * H

    def kernel(*refs):
        it = iter(refs)
        gi0_ref = next(it)           # (T*Bp, 3H)  precomputed layer-0 input projection
        h0_ref = next(it)            # (L, Bp, H)
        whh = [next(it)]             # layer 0 recurrent weights (H, 3H)
        bhh = [next(it)]             # layer 0 recurrent bias    (1, 3H)
        wih = [None]
        bih = [None]
        for _ in range(1, n_layers):
            wih.append(next(it))     # (H, 3H)
            bih.append(next(it))     # (1, 3H)
            whh.append(next(it))     # (H, 3H)
            bhh.append(next(it))     # (1, 3H)
        fcw_ref = next(it)           # (H, O)
        fcb_ref = next(it)           # (1, O)
        y_ref = next(it)             # (Bp, O)
        hout_ref = next(it)          # (L, Bp, H)
        seq_scr = next(it)           # VMEM (T*Bp, H)   current layer's output sequence
        gi_scr = next(it)            # VMEM (T*Bp, 3H)  hoisted input projections (l>=1)

        def gates(gi, gh, h_prev):
            # gate order (r, z, n) along the 3H axis, matching PyTorch.
            r = jax.nn.sigmoid(gi[:, :H] + gh[:, :H])
            z = jax.nn.sigmoid(gi[:, H:2 * H] + gh[:, H:2 * H])
            n = jnp.tanh(gi[:, 2 * H:] + r * gh[:, 2 * H:])
            return (1.0 - z) * n + z * h_prev

        def run_layer(gi_src_ref, l):
            whh_c = whh[l][...]                                   # load once   (H, 3H)
            bhh_c = jnp.broadcast_to(bhh[l][...], (Bp, H3))       # hoist bias broadcast
            h = h0_ref[l]                                         # (Bp, H)
            # Time recurrence is inherently sequential; T is small so a static unroll
            # (equivalent to fori_loop(unroll=True)) keeps all slices static+aligned.
            for t in range(T):
                row = t * Bp                                      # Bp % 8 == 0 -> aligned
                gi = gi_src_ref[pl.ds(row, Bp), :]                # (Bp, 3H)
                gh = jnp.dot(h, whh_c,
                             preferred_element_type=jnp.float32) + bhh_c
                h = gates(gi, gh, h)
                seq_scr[pl.ds(row, Bp), :] = h                    # layer output at step t
            hout_ref[l] = h.astype(hout_ref.dtype)                # final hidden, once
            return h

        # Layer 0: its input projection was hoisted to the wrapper (one batched matmul).
        h = run_layer(gi0_ref, 0)

        # Layers 1..L-1: hoist this layer's input projection over the whole sequence
        # into a single MXU matmul, then run the recurrence (1 dot per timestep).
        for l in range(1, n_layers):
            gi_scr[...] = (jnp.dot(seq_scr[...], wih[l][...],
                                   preferred_element_type=jnp.float32)
                           + bih[l][...])
            h = run_layer(gi_scr, l)

        # fc(relu(out[:, -1])): last-timestep output of the last layer == its final hidden.
        y = (jnp.dot(jnp.maximum(h, 0.0), fcw_ref[...],
                     preferred_element_type=jnp.float32) + fcb_ref[...])
        y_ref[...] = y.astype(y_ref.dtype)

    return kernel


# ----------------------------------------------------------------------------
# GRUNet forward (wrapper)
# ----------------------------------------------------------------------------
def grunet_forward(params, x, h0):
    """x: (B, T, input_dim), h0: (n_layers, B, H).  Returns (out (B, O), h (n_layers, B, H))."""
    B, T, _ = x.shape
    gru = params["gru"]
    L = len(gru)
    H = gru[0]["whh"].shape[0]
    O = params["fc_w"].shape[-1]

    # Pad batch to a multiple of 8 sublanes (no-op for B % 8 == 0, e.g. batch_size=48).
    Bp = ((B + 7) // 8) * 8
    if Bp != B:
        x = jnp.pad(x, ((0, Bp - B), (0, 0), (0, 0)))
        h0 = jnp.pad(h0, ((0, 0), (0, Bp - B), (0, 0)))

    # Hoist the layer-0 input projection out of the recurrence: one batched matmul over
    # all timesteps, fused over the 3 gates (r, z, n).  Result is time-major, flattened
    # to (T*Bp, 3H) so the kernel reads tile-aligned per-timestep slabs.
    gi0 = jnp.einsum("btd,dh->tbh", x, gru[0]["wih"]) + gru[0]["bih"]   # (T, Bp, 3H)
    gi0 = gi0.reshape(T * Bp, 3 * H)

    inputs = [gi0, h0, gru[0]["whh"], gru[0]["bhh"]]
    for l in range(1, L):
        inputs += [gru[l]["wih"], gru[l]["bih"], gru[l]["whh"], gru[l]["bhh"]]
    inputs += [params["fc_w"], params["fc_b"]]

    vmem = pl.BlockSpec(memory_space=pltpu.MemorySpace.VMEM)
    y_p, h_p = pl.pallas_call(
        _make_grunet_kernel(L, T, Bp, H),
        out_shape=(jax.ShapeDtypeStruct((Bp, O), x.dtype),
                   jax.ShapeDtypeStruct((L, Bp, H), x.dtype)),
        in_specs=[vmem] * len(inputs),
        out_specs=(vmem, vmem),
        scratch_shapes=[pltpu.VMEM((T * Bp, H), jnp.float32),
                        pltpu.VMEM((T * Bp, 3 * H), jnp.float32)],
    )(*inputs)
    return y_p[:B], h_p[:, :B]


# ----------------------------------------------------------------------------
# Deterministic parameter init (PyTorch-style uniform(-1/sqrt(H), 1/sqrt(H)))
# Weights stored pre-fused: wih (D_in, 3H), whh (H, 3H), biases (1, 3H), gate order r,z,n.
# ----------------------------------------------------------------------------
def init_params(key, input_dim, hidden_dim, output_dim, n_layers):
    H = hidden_dim
    bound = 1.0 / float(H) ** 0.5
    params = {"gru": []}
    for l in range(n_layers):
        d_in = input_dim if l == 0 else H
        key, k1, k2, k3, k4 = jax.random.split(key, 5)
        params["gru"].append({
            "wih": jax.random.uniform(k1, (d_in, 3 * H), jnp.float32, -bound, bound),
            "whh": jax.random.uniform(k2, (H, 3 * H), jnp.float32, -bound, bound),
            "bih": jax.random.uniform(k3, (1, 3 * H), jnp.float32, -bound, bound),
            "bhh": jax.random.uniform(k4, (1, 3 * H), jnp.float32, -bound, bound),
        })
    key, k5, k6 = jax.random.split(key, 3)
    params["fc_w"] = jax.random.uniform(k5, (H, output_dim), jnp.float32, -bound, bound)
    params["fc_b"] = jax.random.uniform(k6, (1, output_dim), jnp.float32, -bound, bound)
    return params


# ----------------------------------------------------------------------------
# Pure-JAX reference (for correctness check)
# ----------------------------------------------------------------------------
def grunet_reference(params, x, h0):
    B, T, _ = x.shape
    H = params["gru"][0]["whh"].shape[0]
    layer_in = x
    h_finals = []
    for l, lp in enumerate(params["gru"]):
        h = h0[l]
        outs = []
        for t in range(T):
            xt = layer_in[:, t]
            gi = xt @ lp["wih"] + lp["bih"]
            gh = h @ lp["whh"] + lp["bhh"]
            r = jax.nn.sigmoid(gi[:, :H] + gh[:, :H])
            z = jax.nn.sigmoid(gi[:, H:2 * H] + gh[:, H:2 * H])
            n = jnp.tanh(gi[:, 2 * H:] + r * gh[:, 2 * H:])
            h = (1.0 - z) * n + z * h
            outs.append(h)
        layer_in = jnp.stack(outs, axis=1)
        h_finals.append(h)
    y = jnp.maximum(layer_in[:, -1], 0.0) @ params["fc_w"] + params["fc_b"]
    return y, jnp.stack(h_finals, axis=0)


if __name__ == "__main__":
    B, T = 2, 8
    input_dim, hidden_dim, output_dim, n_layers = 4, 32, 1, 2

    key = jax.random.PRNGKey(0)
    kp, kx = jax.random.split(key)
    params = init_params(kp, input_dim, hidden_dim, output_dim, n_layers)
    x = jax.random.normal(kx, (B, T, input_dim), jnp.float32)
    h0 = jnp.zeros((n_layers, B, hidden_dim), jnp.float32)

    fwd = jax.jit(functools.partial(grunet_forward, params))
    y, h = fwd(x, h0)
    jax.block_until_ready((y, h))

    y_ref, h_ref = grunet_reference(params, x, h0)
    assert y.shape == (B, output_dim) and h.shape == (n_layers, B, hidden_dim)
    assert jnp.allclose(y, y_ref, atol=1e-4, rtol=1e-4), "output mismatch"
    assert jnp.allclose(h, h_ref, atol=1e-4, rtol=1e-4), "hidden mismatch"

    print("KERNEL_OK")
</pallas_src>

<mosaic_0001>
module attributes {stable_mosaic.version = 11 : i64} {
  func.func @kernel(%arg0: memref<64x96xf32, #tpu.memory_space<vmem>>, %arg1: memref<2x8x32xf32, #tpu.memory_space<vmem>>, %arg2: memref<32x96xf32, #tpu.memory_space<vmem>>, %arg3: memref<1x96xf32, #tpu.memory_space<vmem>>, %arg4: memref<32x96xf32, #tpu.memory_space<vmem>>, %arg5: memref<1x96xf32, #tpu.memory_space<vmem>>, %arg6: memref<32x96xf32, #tpu.memory_space<vmem>>, %arg7: memref<1x96xf32, #tpu.memory_space<vmem>>, %arg8: memref<32x1xf32, #tpu.memory_space<vmem>>, %arg9: memref<1x1xf32, #tpu.memory_space<vmem>>, %arg10: memref<8x1xf32, #tpu.memory_space<vmem>>, %arg11: memref<2x8x32xf32, #tpu.memory_space<vmem>>, %arg12: memref<64x32xf32, #tpu.memory_space<vmem>>, %arg13: memref<64x96xf32, #tpu.memory_space<vmem>>) attributes {dimension_semantics = [], scalar_prefetch = 0 : i64, scratch_operands = 2 : i64, tpu.core_type = #tpu.core_type<tc>} {
    %c0 = arith.constant 0 : index
    %c0_0 = arith.constant 0 : index
    %0 = vector.load %arg2[%c0, %c0_0] : memref<32x96xf32, #tpu.memory_space<vmem>>, vector<32x96xf32>
    %c0_1 = arith.constant 0 : index
    %c0_2 = arith.constant 0 : index
    %1 = vector.load %arg3[%c0_1, %c0_2] : memref<1x96xf32, #tpu.memory_space<vmem>>, vector<1x96xf32>
    %2 = vector.shape_cast %1 : vector<1x96xf32> to vector<1x96xf32>
    %3 = vector.broadcast %2 : vector<1x96xf32> to vector<8x96xf32>
    %c0_3 = arith.constant 0 : index
    %c0_4 = arith.constant 0 : index
    %c0_5 = arith.constant 0 : index
    %4 = vector.load %arg1[%c0_3, %c0_4, %c0_5] : memref<2x8x32xf32, #tpu.memory_space<vmem>>, vector<1x8x32xf32>
    %5 = vector.shape_cast %4 : vector<1x8x32xf32> to vector<8x32xf32>
    %c0_6 = arith.constant 0 : index
    %c0_7 = arith.constant 0 : index
    %6 = vector.load %arg0[%c0_6, %c0_7] : memref<64x96xf32, #tpu.memory_space<vmem>>, vector<8x96xf32>
    %cst = arith.constant dense<0.000000e+00> : vector<8x96xf32>
    %7 = tpu.matmul %5, %0, %cst {dimension_numbers = #tpu.dot_dimension_numbers<[1], [0], [0], [1], [0, 0, 1, 1], [], []>} : vector<8x32xf32>, vector<32x96xf32>, vector<8x96xf32> -> vector<8x96xf32>
    %8 = arith.addf %7, %3 : vector<8x96xf32>
    %9 = vector.extract_strided_slice %6 {offsets = [0, 0], sizes = [8, 32], strides = [1, 1]} : vector<8x96xf32> to vector<8x32xf32>
    %10 = vector.extract_strided_slice %8 {offsets = [0, 0], sizes = [8, 32], strides = [1, 1]} : vector<8x96xf32> to vector<8x32xf32>
    %11 = arith.addf %9, %10 : vector<8x32xf32>
    %12 = arith.negf %11 : vector<8x32xf32>
    %13 = math.exp %12 : vector<8x32xf32>
    %cst_8 = arith.constant 1.000000e+00 : f32
    %14 = vector.broadcast %cst_8 : f32 to vector<8x32xf32>
    %15 = arith.addf %14, %13 : vector<8x32xf32>
    %16 = arith.divf %14, %15 : vector<8x32xf32>
    %17 = vector.extract_strided_slice %6 {offsets = [0, 32], sizes = [8, 32], strides = [1, 1]} : vector<8x96xf32> to vector<8x32xf32>
    %18 = vector.extract_strided_slice %8 {offsets = [0, 32], sizes = [8, 32], strides = [1, 1]} : vector<8x96xf32> to vector<8x32xf32>
    %19 = arith.addf %17, %18 : vector<8x32xf32>
    %20 = arith.negf %19 : vector<8x32xf32>
    %21 = math.exp %20 : vector<8x32xf32>
    %cst_9 = arith.constant 1.000000e+00 : f32
    %22 = vector.broadcast %cst_9 : f32 to vector<8x32xf32>
    %23 = arith.addf %22, %21 : vector<8x32xf32>
    %24 = arith.divf %22, %23 : vector<8x32xf32>
    %25 = vector.extract_strided_slice %6 {offsets = [0, 64], sizes = [8, 32], strides = [1, 1]} : vector<8x96xf32> to vector<8x32xf32>
    %26 = vector.extract_strided_slice %8 {offsets = [0, 64], sizes = [8, 32], strides = [1, 1]} : vector<8x96xf32> to vector<8x32xf32>
    %27 = arith.mulf %16, %26 : vector<8x32xf32>
    %28 = arith.addf %25, %27 : vector<8x32xf32>
    %29 = math.tanh %28 : vector<8x32xf32>
    %cst_10 = arith.constant 1.000000e+00 : f32
    %30 = vector.broadcast %cst_10 : f32 to vector<8x32xf32>
    %31 = arith.subf %30, %24 : vector<8x32xf32>
    %32 = arith.mulf %31, %29 : vector<8x32xf32>
    %33 = arith.mulf %24, %5 : vector<8x32xf32>
    %34 = arith.addf %32, %33 : vector<8x32xf32>
    %c0_11 = arith.constant 0 : index
    %c0_12 = arith.constant 0 : index
    %35 = vector.load %arg12[%c0_11, %c0_12] : memref<64x32xf32, #tpu.memory_space<vmem>>, vector<8x32xf32>
    tpu.vector_store %arg12[%c0_11, %c0_12], %34 {strides = array<i32>} : memref<64x32xf32, #tpu.memory_space<vmem>>, vector<8x32xf32>,
    %c8 = arith.constant 8 : index
    %c0_13 = arith.constant 0 : index
    %36 = vector.load %arg0[%c8, %c0_13] : memref<64x96xf32, #tpu.memory_space<vmem>>, vector<8x96xf32>
    %cst_14 = arith.constant dense<0.000000e+00> : vector<8x96xf32>
    %37 = tpu.matmul %34, %0, %cst_14 {dimension_numbers = #tpu.dot_dimension_numbers<[1], [0], [0], [1], [0, 0, 1, 1], [], []>} : vector<8x32xf32>, vector<32x96xf32>, vector<8x96xf32> -> vector<8x96xf32>
    %38 = arith.addf %37, %3 : vector<8x96xf32>
    %39 = vector.extract_strided_slice %36 {offsets = [0, 0], sizes = [8, 32], strides = [1, 1]} : vector<8x96xf32> to vector<8x32xf32>
    %40 = vector.extract_strided_slice %38 {offsets = [0, 0], sizes = [8, 32], strides = [1, 1]} : vector<8x96xf32> to vector<8x32xf32>
    %41 = arith.addf %39, %40 : vector<8x32xf32>
    %42 = arith.negf %41 : vector<8x32xf32>
    %43 = math.exp %42 : vector<8x32xf32>
    %cst_15 = arith.constant 1.000000e+00 : f32
    %44 = vector.broadcast %cst_15 : f32 to vector<8x32xf32>
    %45 = arith.addf %44, %43 : vector<8x32xf32>
    %46 = arith.divf %44, %45 : vector<8x32xf32>
    %47 = vector.extract_strided_slice %36 {offsets = [0, 32], sizes = [8, 32], strides = [1, 1]} : vector<8x96xf32> to vector<8x32xf32>
    %48 = vector.extract_strided_slice %38 {offsets = [0, 32], sizes = [8, 32], strides = [1, 1]} : vector<8x96xf32> to vector<8x32xf32>
    %49 = arith.addf %47, %48 : vector<8x32xf32>
    %50 = arith.negf %49 : vector<8x32xf32>
    %51 = math.exp %50 : vector<8x32xf32>
    %cst_16 = arith.constant 1.000000e+00 : f32
    %52 = vector.broadcast %cst_16 : f32 to vector<8x32xf32>
    %53 = arith.addf %52, %51 : vector<8x32xf32>
    %54 = arith.divf %52, %53 : vector<8x32xf32>
    %55 = vector.extract_strided_slice %36 {offsets = [0, 64], sizes = [8, 32], strides = [1, 1]} : vector<8x96xf32> to vector<8x32xf32>
    %56 = vector.extract_strided_slice %38 {offsets = [0, 64], sizes = [8, 32], strides = [1, 1]} : vector<8x96xf32> to vector<8x32xf32>
    %57 = arith.mulf %46, %56 : vector<8x32xf32>
    %58 = arith.addf %55, %57 : vector<8x32xf32>
    %59 = math.tanh %58 : vector<8x32xf32>
    %cst_17 = arith.constant 1.000000e+00 : f32
    %60 = vector.broadcast %cst_17 : f32 to vector<8x32xf32>
    %61 = arith.subf %60, %54 : vector<8x32xf32>
    %62 = arith.mulf %61, %59 : vector<8x32xf32>
    %63 = arith.mulf %54, %34 : vector<8x32xf32>
    %64 = arith.addf %62, %63 : vector<8x32xf32>
    %c8_18 = arith.constant 8 : index
    %c0_19 = arith.constant 0 : index
    %65 = vector.load %arg12[%c8_18, %c0_19] : memref<64x32xf32, #tpu.memory_space<vmem>>, vector<8x32xf32>
    tpu.vector_store %arg12[%c8_18, %c0_19], %64 {strides = array<i32>} : memref<64x32xf32, #tpu.memory_space<vmem>>, vector<8x32xf32>,
    %c16 = arith.constant 16 : index
    %c0_20 = arith.constant 0 : index
    %66 = vector.load %arg0[%c16, %c0_20] : memref<64x96xf32, #tpu.memory_space<vmem>>, vector<8x96xf32>
    %cst_21 = arith.constant dense<0.000000e+00> : vector<8x96xf32>
    %67 = tpu.matmul %64, %0, %cst_21 {dimension_numbers = #tpu.dot_dimension_numbers<[1], [0], [0], [1], [0, 0, 1, 1], [], []>} : vector<8x32xf32>, vector<32x96xf32>, vector<8x96xf32> -> vector<8x96xf32>
    %68 = arith.addf %67, %3 : vector<8x96xf32>
    %69 = vector.extract_strided_slice %66 {offsets = [0, 0], sizes = [8, 32], strides = [1, 1]} : vector<8x96xf32> to vector<8x32xf32>
    %70 = vector.extract_strided_slice %68 {offsets = [0, 0], sizes = [8, 32], strides = [1, 1]} : vector<8x96xf32> to vector<8x32xf32>
    %71 = arith.addf %69, %70 : vector<8x32xf32>
    %72 = arith.negf %71 : vector<8x32xf32>
    %73 = math.exp %72 : vector<8x32xf32>
    %cst_22 = arith.constant 1.000000e+00 : f32
    %74 = vector.broadcast %cst_22 : f32 to vector<8x32xf32>
    %75 = arith.addf %74, %73 : vector<8x32xf32>
    %76 = arith.divf %74, %75 : vector<8x32xf32>
    %77 = vector.extract_strided_slice %66 {offsets = [0, 32], sizes = [8, 32], strides = [1, 1]} : vector<8x96xf32> to vector<8x32xf32>
    %78 = vector.extract_strided_slice %68 {offsets = [0, 32], sizes = [8, 32], strides = [1, 1]} : vector<8x96xf32> to vector<8x32xf32>
    %79 = arith.addf %77, %78 : vector<8x32xf32>
    %80 = arith.negf %79 : vector<8x32xf32>
    %81 = math.exp %80 : vector<8x32xf32>
    %cst_23 = arith.constant 1.000000e+00 : f32
    %82 = vector.broadcast %cst_23 : f32 to vector<8x32xf32>
    %83 = arith.addf %82, %81 : vector<8x32xf32>
    %84 = arith.divf %82, %83 : vector<8x32xf32>
    %85 = vector.extract_strided_slice %66 {offsets = [0, 64], sizes = [8, 32], strides = [1, 1]} : vector<8x96xf32> to vector<8x32xf32>
    %86 = vector.extract_strided_slice %68 {offsets = [0, 64], sizes = [8, 32], strides = [1, 1]} : vector<8x96xf32> to vector<8x32xf32>
    %87 = arith.mulf %76, %86 : vector<8x32xf32>
    %88 = arith.addf %85, %87 : vector<8x32xf32>
    %89 = math.tanh %88 : vector<8x32xf32>
    %cst_24 = arith.constant 1.000000e+00 : f32
    %90 = vector.broadcast %cst_24 : f32 to vector<8x32xf32>
    %91 = arith.subf %90, %84 : vector<8x32xf32>
    %92 = arith.mulf %91, %89 : vector<8x32xf32>
    %93 = arith.mulf %84, %64 : vector<8x32xf32>
    %94 = arith.addf %92, %93 : vector<8x32xf32>
    %c16_25 = arith.constant 16 : index
    %c0_26 = arith.constant 0 : index
    %95 = vector.load %arg12[%c16_25, %c0_26] : memref<64x32xf32, #tpu.memory_space<vmem>>, vector<8x32xf32>
    tpu.vector_store %arg12[%c16_25, %c0_26], %94 {strides = array<i32>} : memref<64x32xf32, #tpu.memory_space<vmem>>, vector<8x32xf32>,
    %c24 = arith.constant 24 : index
    %c0_27 = arith.constant 0 : index
    %96 = vector.load %arg0[%c24, %c0_27] : memref<64x96xf32, #tpu.memory_space<vmem>>, vector<8x96xf32>
    %cst_28 = arith.constant dense<0.000000e+00> : vector<8x96xf32>
    %97 = tpu.matmul %94, %0, %cst_28 {dimension_numbers = #tpu.dot_dimension_numbers<[1], [0], [0], [1], [0, 0, 1, 1], [], []>} : vector<8x32xf32>, vector<32x96xf32>, vector<8x96xf32> -> vector<8x96xf32>
    %98 = arith.addf %97, %3 : vector<8x96xf32>
    %99 = vector.extract_strided_slice %96 {offsets = [0, 0], sizes = [8, 32], strides = [1, 1]} : vector<8x96xf32> to vector<8x32xf32>
    %100 = vector.extract_strided_slice %98 {offsets = [0, 0], sizes = [8, 32], strides = [1, 1]} : vector<8x96xf32> to vector<8x32xf32>
    %101 = arith.addf %99, %100 : vector<8x32xf32>
    %102 = arith.negf %101 : vector<8x32xf32>
    %103 = math.exp %102 : vector<8x32xf32>
    %cst_29 = arith.constant 1.000000e+00 : f32
    %104 = vector.broadcast %cst_29 : f32 to vector<8x32xf32>
    %105 = arith.addf %104, %103 : vector<8x32xf32>
    %106 = arith.divf %104, %105 : vector<8x32xf32>
    %107 = vector.extract_strided_slice %96 {offsets = [0, 32], sizes = [8, 32], strides = [1, 1]} : vector<8x96xf32> to vector<8x32xf32>
    %108 = vector.extract_strided_slice %98 {offsets = [0, 32], sizes = [8, 32], strides = [1, 1]} : vector<8x96xf32> to vector<8x32xf32>
    %109 = arith.addf %107, %108 : vector<8x32xf32>
    %110 = arith.negf %109 : vector<8x32xf32>
    %111 = math.exp %110 : vector<8x32xf32>
    %cst_30 = arith.constant 1.000000e+00 : f32
    %112 = vector.broadcast %cst_30 : f32 to vector<8x32xf32>
    %113 = arith.addf %112, %111 : vector<8x32xf32>
    %114 = arith.divf %112, %113 : vector<8x32xf32>
    %115 = vector.extract_strided_slice %96 {offsets = [0, 64], sizes = [8, 32], strides = [1, 1]} : vector<8x96xf32> to vector<8x32xf32>
    %116 = vector.extract_strided_slice %98 {offsets = [0, 64], sizes = [8, 32], strides = [1, 1]} : vector<8x96xf32> to vector<8x32xf32>
    %117 = arith.mulf %106, %116 : vector<8x32xf32>
    %118 = arith.addf %115, %117 : vector<8x32xf32>
    %119 = math.tanh %118 : vector<8x32xf32>
    %cst_31 = arith.constant 1.000000e+00 : f32
    %120 = vector.broadcast %cst_31 : f32 to vector<8x32xf32>
    %121 = arith.subf %120, %114 : vector<8x32xf32>
    %122 = arith.mulf %121, %119 : vector<8x32xf32>
    %123 = arith.mulf %114, %94 : vector<8x32xf32>
    %124 = arith.addf %122, %123 : vector<8x32xf32>
    %c24_32 = arith.constant 24 : index
    %c0_33 = arith.constant 0 : index
    %125 = vector.load %arg12[%c24_32, %c0_33] : memref<64x32xf32, #tpu.memory_space<vmem>>, vector<8x32xf32>
    tpu.vector_store %arg12[%c24_32, %c0_33], %124 {strides = array<i32>} : memref<64x32xf32, #tpu.memory_space<vmem>>, vector<8x32xf32>,
    %c32 = arith.constant 32 : index
    %c0_34 = arith.constant 0 : index
    %126 = vector.load %arg0[%c32, %c0_34] : memref<64x96xf32, #tpu.memory_space<vmem>>, vector<8x96xf32>
    %cst_35 = arith.constant dense<0.000000e+00> : vector<8x96xf32>
    %127 = tpu.matmul %124, %0, %cst_35 {dimension_numbers = #tpu.dot_dimension_numbers<[1], [0], [0], [1], [0, 0, 1, 1], [], []>} : vector<8x32xf32>, vector<32x96xf32>, vector<8x96xf32> -> vector<8x96xf32>
    %128 = arith.addf %127, %3 : vector<8x96xf32>
    %129 = vector.extract_strided_slice %126 {offsets = [0, 0], sizes = [8, 32], strides = [1, 1]} : vector<8x96xf32> to vector<8x32xf32>
    %130 = vector.extract_strided_slice %128 {offsets = [0, 0], sizes = [8, 32], strides = [1, 1]} : vector<8x96xf32> to vector<8x32xf32>
    %131 = arith.addf %129, %130 : vector<8x32xf32>
    %132 = arith.negf %131 : vector<8x32xf32>
    %133 = math.exp %132 : vector<8x32xf32>
    %cst_36 = arith.constant 1.000000e+00 : f32
    %134 = vector.broadcast %cst_36 : f32 to vector<8x32xf32>
    %135 = arith.addf %134, %133 : vector<8x32xf32>
    %136 = arith.divf %134, %135 : vector<8x32xf32>
    %137 = vector.extract_strided_slice %126 {offsets = [0, 32], sizes = [8, 32], strides = [1, 1]} : vector<8x96xf32> to vector<8x32xf32>
    %138 = vector.extract_strided_slice %128 {offsets = [0, 32], sizes = [8, 32], strides = [1, 1]} : vector<8x96xf32> to vector<8x32xf32>
    %139 = arith.addf %137, %138 : vector<8x32xf32>
    %140 = arith.negf %139 : vector<8x32xf32>
    %141 = math.exp %140 : vector<8x32xf32>
    %cst_37 = arith.constant 1.000000e+00 : f32
    %142 = vector.broadcast %cst_37 : f32 to vector<8x32xf32>
    %143 = arith.addf %142, %141 : vector<8x32xf32>
    %144 = arith.divf %142, %143 : vector<8x32xf32>
    %145 = vector.extract_strided_slice %126 {offsets = [0, 64], sizes = [8, 32], strides = [1, 1]} : vector<8x96xf32> to vector<8x32xf32>
    %146 = vector.extract_strided_slice %128 {offsets = [0, 64], sizes = [8, 32], strides = [1, 1]} : vector<8x96xf32> to vector<8x32xf32>
    %147 = arith.mulf %136, %146 : vector<8x32xf32>
    %148 = arith.addf %145, %147 : vector<8x32xf32>
    %149 = math.tanh %148 : vector<8x32xf32>
    %cst_38 = arith.constant 1.000000e+00 : f32
    %150 = vector.broadcast %cst_38 : f32 to vector<8x32xf32>
    %151 = arith.subf %150, %144 : vector<8x32xf32>
    %152 = arith.mulf %151, %149 : vector<8x32xf32>
    %153 = arith.mulf %144, %124 : vector<8x32xf32>
    %154 = arith.addf %152, %153 : vector<8x32xf32>
    %c32_39 = arith.constant 32 : index
    %c0_40 = arith.constant 0 : index
    %155 = vector.load %arg12[%c32_39, %c0_40] : memref<64x32xf32, #tpu.memory_space<vmem>>, vector<8x32xf32>
    tpu.vector_store %arg12[%c32_39, %c0_40], %154 {strides = array<i32>} : memref<64x32xf32, #tpu.memory_space<vmem>>, vector<8x32xf32>,
    %c40 = arith.constant 40 : index
    %c0_41 = arith.constant 0 : index
    %156 = vector.load %arg0[%c40, %c0_41] : memref<64x96xf32, #tpu.memory_space<vmem>>, vector<8x96xf32>
    %cst_42 = arith.constant dense<0.000000e+00> : vector<8x96xf32>
    %157 = tpu.matmul %154, %0, %cst_42 {dimension_numbers = #tpu.dot_dimension_numbers<[1], [0], [0], [1], [0, 0, 1, 1], [], []>} : vector<8x32xf32>, vector<32x96xf32>, vector<8x96xf32> -> vector<8x96xf32>
    %158 = arith.addf %157, %3 : vector<8x96xf32>
    %159 = vector.extract_strided_slice %156 {offsets = [0, 0], sizes = [8, 32], strides = [1, 1]} : vector<8x96xf32> to vector<8x32xf32>
    %160 = vector.extract_strided_slice %158 {offsets = [0, 0], sizes = [8, 32], strides = [1, 1]} : vector<8x96xf32> to vector<8x32xf32>
    %161 = arith.addf %159, %160 : vector<8x32xf32>
    %162 = arith.negf %161 : vector<8x32xf32>
    %163 = math.exp %162 : vector<8x32xf32>
    %cst_43 = arith.constant 1.000000e+00 : f32
    %164 = vector.broadcast %cst_43 : f32 to vector<8x32xf32>
    %165 = arith.addf %164, %163 : vector<8x32xf32>
    %166 = arith.divf %164, %165 : vector<8x32xf32>
    %167 = vector.extract_strided_slice %156 {offsets = [0, 32], sizes = [8, 32], strides = [1, 1]} : vector<8x96xf32> to vector<8x32xf32>
    %168 = vector.extract_strided_slice %158 {offsets = [0, 32], sizes = [8, 32], strides = [1, 1]} : vector<8x96xf32> to vector<8x32xf32>
    %169 = arith.addf %167, %168 : vector<8x32xf32>
    %170 = arith.negf %169 : vector<8x32xf32>
    %171 = math.exp %170 : vector<8x32xf32>
    %cst_44 = arith.constant 1.000000e+00 : f32
    %172 = vector.broadcast %cst_44 : f32 to vector<8x32xf32>
    %173 = arith.addf %172, %171 : vector<8x32xf32>
    %174 = arith.divf %172, %173 : vector<8x32xf32>
    %175 = vector.extract_strided_slice %156 {offsets = [0, 64], sizes = [8, 32], strides = [1, 1]} : vector<8x96xf32> to vector<8x32xf32>
    %176 = vector.extract_strided_slice %158 {offsets = [0, 64], sizes = [8, 32], strides = [1, 1]} : vector<8x96xf32> to vector<8x32xf32>
    %177 = arith.mulf %166, %176 : vector<8x32xf32>
    %178 = arith.addf %175, %177 : vector<8x32xf32>
    %179 = math.tanh %178 : vector<8x32xf32>
    %cst_45 = arith.constant 1.000000e+00 : f32
    %180 = vector.broadcast %cst_45 : f32 to vector<8x32xf32>
    %181 = arith.subf %180, %174 : vector<8x32xf32>
    %182 = arith.mulf %181, %179 : vector<8x32xf32>
    %183 = arith.mulf %174, %154 : vector<8x32xf32>
    %184 = arith.addf %182, %183 : vector<8x32xf32>
    %c40_46 = arith.constant 40 : index
    %c0_47 = arith.constant 0 : index
    %185 = vector.load %arg12[%c40_46, %c0_47] : memref<64x32xf32, #tpu.memory_space<vmem>>, vector<8x32xf32>
    tpu.vector_store %arg12[%c40_46, %c0_47], %184 {strides = array<i32>} : memref<64x32xf32, #tpu.memory_space<vmem>>, vector<8x32xf32>,
    %c48 = arith.constant 48 : index
    %c0_48 = arith.constant 0 : index
    %186 = vector.load %arg0[%c48, %c0_48] : memref<64x96xf32, #tpu.memory_space<vmem>>, vector<8x96xf32>
    %cst_49 = arith.constant dense<0.000000e+00> : vector<8x96xf32>
    %187 = tpu.matmul %184, %0, %cst_49 {dimension_numbers = #tpu.dot_dimension_numbers<[1], [0], [0], [1], [0, 0, 1, 1], [], []>} : vector<8x32xf32>, vector<32x96xf32>, vector<8x96xf32> -> vector<8x96xf32>
    %188 = arith.addf %187, %3 : vector<8x96xf32>
    %189 = vector.extract_strided_slice %186 {offsets = [0, 0], sizes = [8, 32], strides = [1, 1]} : vector<8x96xf32> to vector<8x32xf32>
    %190 = vector.extract_strided_slice %188 {offsets = [0, 0], sizes = [8, 32], strides = [1, 1]} : vector<8x96xf32> to vector<8x32xf32>
    %191 = arith.addf %189, %190 : vector<8x32xf32>
    %192 = arith.negf %191 : vector<8x32xf32>
    %193 = math.exp %192 : vector<8x32xf32>
    %cst_50 = arith.constant 1.000000e+00 : f32
    %194 = vector.broadcast %cst_50 : f32 to vector<8x32xf32>
    %195 = arith.addf %194, %193 : vector<8x32xf32>
    %196 = arith.divf %194, %195 : vector<8x32xf32>
    %197 = vector.extract_strided_slice %186 {offsets = [0, 32], sizes = [8, 32], strides = [1, 1]} : vector<8x96xf32> to vector<8x32xf32>
    %198 = vector.extract_strided_slice %188 {offsets = [0, 32], sizes = [8, 32], strides = [1, 1]} : vector<8x96xf32> to vector<8x32xf32>
    %199 = arith.addf %197, %198 : vector<8x32xf32>
    %200 = arith.negf %199 : vector<8x32xf32>
    %201 = math.exp %200 : vector<8x32xf32>
    %cst_51 = arith.constant 1.000000e+00 : f32
    %202 = vector.broadcast %cst_51 : f32 to vector<8x32xf32>
    %203 = arith.addf %202, %201 : vector<8x32xf32>
    %204 = arith.divf %202, %203 : vector<8x32xf32>
    %205 = vector.extract_strided_slice %186 {offsets = [0, 64], sizes = [8, 32], strides = [1, 1]} : vector<8x96xf32> to vector<8x32xf32>
    %206 = vector.extract_strided_slice %188 {offsets = [0, 64], sizes = [8, 32], strides = [1, 1]} : vector<8x96xf32> to vector<8x32xf32>
    %207 = arith.mulf %196, %206 : vector<8x32xf32>
    %208 = arith.addf %205, %207 : vector<8x32xf32>
    %209 = math.tanh %208 : vector<8x32xf32>
    %cst_52 = arith.constant 1.000000e+00 : f32
    %210 = vector.broadcast %cst_52 : f32 to vector<8x32xf32>
    %211 = arith.subf %210, %204 : vector<8x32xf32>
    %212 = arith.mulf %211, %209 : vector<8x32xf32>
    %213 = arith.mulf %204, %184 : vector<8x32xf32>
    %214 = arith.addf %212, %213 : vector<8x32xf32>
    %c48_53 = arith.constant 48 : index
    %c0_54 = arith.constant 0 : index
    %215 = vector.load %arg12[%c48_53, %c0_54] : memref<64x32xf32, #tpu.memory_space<vmem>>, vector<8x32xf32>
    tpu.vector_store %arg12[%c48_53, %c0_54], %214 {strides = array<i32>} : memref<64x32xf32, #tpu.memory_space<vmem>>, vector<8x32xf32>,
    %c56 = arith.constant 56 : index
    %c0_55 = arith.constant 0 : index
    %216 = vector.load %arg0[%c56, %c0_55] : memref<64x96xf32, #tpu.memory_space<vmem>>, vector<8x96xf32>
    %cst_56 = arith.constant dense<0.000000e+00> : vector<8x96xf32>
    %217 = tpu.matmul %214, %0, %cst_56 {dimension_numbers = #tpu.dot_dimension_numbers<[1], [0], [0], [1], [0, 0, 1, 1], [], []>} : vector<8x32xf32>, vector<32x96xf32>, vector<8x96xf32> -> vector<8x96xf32>
    %218 = arith.addf %217, %3 : vector<8x96xf32>
    %219 = vector.extract_strided_slice %216 {offsets = [0, 0], sizes = [8, 32], strides = [1, 1]} : vector<8x96xf32> to vector<8x32xf32>
    %220 = vector.extract_strided_slice %218 {offsets = [0, 0], sizes = [8, 32], strides = [1, 1]} : vector<8x96xf32> to vector<8x32xf32>
    %221 = arith.addf %219, %220 : vector<8x32xf32>
    %222 = arith.negf %221 : vector<8x32xf32>
    %223 = math.exp %222 : vector<8x32xf32>
    %cst_57 = arith.constant 1.000000e+00 : f32
    %224 = vector.broadcast %cst_57 : f32 to vector<8x32xf32>
    %225 = arith.addf %224, %223 : vector<8x32xf32>
    %226 = arith.divf %224, %225 : vector<8x32xf32>
    %227 = vector.extract_strided_slice %216 {offsets = [0, 32], sizes = [8, 32], strides = [1, 1]} : vector<8x96xf32> to vector<8x32xf32>
    %228 = vector.extract_strided_slice %218 {offsets = [0, 32], sizes = [8, 32], strides = [1, 1]} : vector<8x96xf32> to vector<8x32xf32>
    %229 = arith.addf %227, %228 : vector<8x32xf32>
    %230 = arith.negf %229 : vector<8x32xf32>
    %231 = math.exp %230 : vector<8x32xf32>
    %cst_58 = arith.constant 1.000000e+00 : f32
    %232 = vector.broadcast %cst_58 : f32 to vector<8x32xf32>
    %233 = arith.addf %232, %231 : vector<8x32xf32>
    %234 = arith.divf %232, %233 : vector<8x32xf32>
    %235 = vector.extract_strided_slice %216 {offsets = [0, 64], sizes = [8, 32], strides = [1, 1]} : vector<8x96xf32> to vector<8x32xf32>
    %236 = vector.extract_strided_slice %218 {offsets = [0, 64], sizes = [8, 32], strides = [1, 1]} : vector<8x96xf32> to vector<8x32xf32>
    %237 = arith.mulf %226, %236 : vector<8x32xf32>
    %238 = arith.addf %235, %237 : vector<8x32xf32>
    %239 = math.tanh %238 : vector<8x32xf32>
    %cst_59 = arith.constant 1.000000e+00 : f32
    %240 = vector.broadcast %cst_59 : f32 to vector<8x32xf32>
    %241 = arith.subf %240, %234 : vector<8x32xf32>
    %242 = arith.mulf %241, %239 : vector<8x32xf32>
    %243 = arith.mulf %234, %214 : vector<8x32xf32>
    %244 = arith.addf %242, %243 : vector<8x32xf32>
    %c56_60 = arith.constant 56 : index
    %c0_61 = arith.constant 0 : index
    %245 = vector.load %arg12[%c56_60, %c0_61] : memref<64x32xf32, #tpu.memory_space<vmem>>, vector<8x32xf32>
    tpu.vector_store %arg12[%c56_60, %c0_61], %244 {strides = array<i32>} : memref<64x32xf32, #tpu.memory_space<vmem>>, vector<8x32xf32>,
    %c0_62 = arith.constant 0 : index
    %c0_63 = arith.constant 0 : index
    %c0_64 = arith.constant 0 : index
    %246 = vector.load %arg11[%c0_62, %c0_63, %c0_64] : memref<2x8x32xf32, #tpu.memory_space<vmem>>, vector<1x8x32xf32>
    %247 = vector.shape_cast %246 : vector<1x8x32xf32> to vector<8x32xf32>
    %248 = vector.shape_cast %244 : vector<8x32xf32> to vector<1x8x32xf32>
    tpu.vector_store %arg11[%c0_62, %c0_63, %c0_64], %248 {strides = array<i32>} : memref<2x8x32xf32, #tpu.memory_space<vmem>>, vector<1x8x32xf32>,
    %c0_65 = arith.constant 0 : index
    %c0_66 = arith.constant 0 : index
    %249 = vector.load %arg12[%c0_65, %c0_66] : memref<64x32xf32, #tpu.memory_space<vmem>>, vector<64x32xf32>
    %c0_67 = arith.constant 0 : index
    %c0_68 = arith.constant 0 : index
    %250 = vector.load %arg4[%c0_67, %c0_68] : memref<32x96xf32, #tpu.memory_space<vmem>>, vector<32x96xf32>
    %cst_69 = arith.constant dense<0.000000e+00> : vector<64x96xf32>
    %251 = tpu.matmul %249, %250, %cst_69 {dimension_numbers = #tpu.dot_dimension_numbers<[1], [0], [0], [1], [0, 0, 1, 1], [], []>} : vector<64x32xf32>, vector<32x96xf32>, vector<64x96xf32> -> vector<64x96xf32>
    %c0_70 = arith.constant 0 : index
    %c0_71 = arith.constant 0 : index
    %252 = vector.load %arg5[%c0_70, %c0_71] : memref<1x96xf32, #tpu.memory_space<vmem>>, vector<1x96xf32>
    %253 = vector.broadcast %252 : vector<1x96xf32> to vector<64x96xf32>
    %254 = arith.addf %251, %253 : vector<64x96xf32>
    %c0_72 = arith.constant 0 : index
    %c0_73 = arith.constant 0 : index
    %255 = vector.load %arg13[%c0_72, %c0_73] : memref<64x96xf32, #tpu.memory_space<vmem>>, vector<64x96xf32>
    tpu.vector_store %arg13[%c0_72, %c0_73], %254 {strides = array<i32>} : memref<64x96xf32, #tpu.memory_space<vmem>>, vector<64x96xf32>,
    %c0_74 = arith.constant 0 : index
    %c0_75 = arith.constant 0 : index
    %256 = vector.load %arg6[%c0_74, %c0_75] : memref<32x96xf32, #tpu.memory_space<vmem>>, vector<32x96xf32>
    %c0_76 = arith.constant 0 : index
    %c0_77 = arith.constant 0 : index
    %257 = vector.load %arg7[%c0_76, %c0_77] : memref<1x96xf32, #tpu.memory_space<vmem>>, vector<1x96xf32>
    %258 = vector.shape_cast %257 : vector<1x96xf32> to vector<1x96xf32>
    %259 = vector.broadcast %258 : vector<1x96xf32> to vector<8x96xf32>
    %c1 = arith.constant 1 : index
    %c0_78 = arith.constant 0 : index
    %c0_79 = arith.constant 0 : index
    %260 = vector.load %arg1[%c1, %c0_78, %c0_79] : memref<2x8x32xf32, #tpu.memory_space<vmem>>, vector<1x8x32xf32>
    %261 = vector.shape_cast %260 : vector<1x8x32xf32> to vector<8x32xf32>
    %c0_80 = arith.constant 0 : index
    %c0_81 = arith.constant 0 : index
    %262 = vector.load %arg13[%c0_80, %c0_81] : memref<64x96xf32, #tpu.memory_space<vmem>>, vector<8x96xf32>
    %cst_82 = arith.constant dense<0.000000e+00> : vector<8x96xf32>
    %263 = tpu.matmul %261, %256, %cst_82 {dimension_numbers = #tpu.dot_dimension_numbers<[1], [0], [0], [1], [0, 0, 1, 1], [], []>} : vector<8x32xf32>, vector<32x96xf32>, vector<8x96xf32> -> vector<8x96xf32>
    %264 = arith.addf %263, %259 : vector<8x96xf32>
    %265 = vector.extract_strided_slice %262 {offsets = [0, 0], sizes = [8, 32], strides = [1, 1]} : vector<8x96xf32> to vector<8x32xf32>
    %266 = vector.extract_strided_slice %264 {offsets = [0, 0], sizes = [8, 32], strides = [1, 1]} : vector<8x96xf32> to vector<8x32xf32>
    %267 = arith.addf %265, %266 : vector<8x32xf32>
    %268 = arith.negf %267 : vector<8x32xf32>
    %269 = math.exp %268 : vector<8x32xf32>
    %cst_83 = arith.constant 1.000000e+00 : f32
    %270 = vector.broadcast %cst_83 : f32 to vector<8x32xf32>
    %271 = arith.addf %270, %269 : vector<8x32xf32>
    %272 = arith.divf %270, %271 : vector<8x32xf32>
    %273 = vector.extract_strided_slice %262 {offsets = [0, 32], sizes = [8, 32], strides = [1, 1]} : vector<8x96xf32> to vector<8x32xf32>
    %274 = vector.extract_strided_slice %264 {offsets = [0, 32], sizes = [8, 32], strides = [1, 1]} : vector<8x96xf32> to vector<8x32xf32>
    %275 = arith.addf %273, %274 : vector<8x32xf32>
    %276 = arith.negf %275 : vector<8x32xf32>
    %277 = math.exp %276 : vector<8x32xf32>
    %cst_84 = arith.constant 1.000000e+00 : f32
    %278 = vector.broadcast %cst_84 : f32 to vector<8x32xf32>
    %279 = arith.addf %278, %277 : vector<8x32xf32>
    %280 = arith.divf %278, %279 : vector<8x32xf32>
    %281 = vector.extract_strided_slice %262 {offsets = [0, 64], sizes = [8, 32], strides = [1, 1]} : vector<8x96xf32> to vector<8x32xf32>
    %282 = vector.extract_strided_slice %264 {offsets = [0, 64], sizes = [8, 32], strides = [1, 1]} : vector<8x96xf32> to vector<8x32xf32>
    %283 = arith.mulf %272, %282 : vector<8x32xf32>
    %284 = arith.addf %281, %283 : vector<8x32xf32>
    %285 = math.tanh %284 : vector<8x32xf32>
    %cst_85 = arith.constant 1.000000e+00 : f32
    %286 = vector.broadcast %cst_85 : f32 to vector<8x32xf32>
    %287 = arith.subf %286, %280 : vector<8x32xf32>
    %288 = arith.mulf %287, %285 : vector<8x32xf32>
    %289 = arith.mulf %280, %261 : vector<8x32xf32>
    %290 = arith.addf %288, %289 : vector<8x32xf32>
    %c0_86 = arith.constant 0 : index
    %c0_87 = arith.constant 0 : index
    %291 = vector.load %arg12[%c0_86, %c0_87] : memref<64x32xf32, #tpu.memory_space<vmem>>, vector<8x32xf32>
    tpu.vector_store %arg12[%c0_86, %c0_87], %290 {strides = array<i32>} : memref<64x32xf32, #tpu.memory_space<vmem>>, vector<8x32xf32>,
    %c8_88 = arith.constant 8 : index
    %c0_89 = arith.constant 0 : index
    %292 = vector.load %arg13[%c8_88, %c0_89] : memref<64x96xf32, #tpu.memory_space<vmem>>, vector<8x96xf32>
    %cst_90 = arith.constant dense<0.000000e+00> : vector<8x96xf32>
    %293 = tpu.matmul %290, %256, %cst_90 {dimension_numbers = #tpu.dot_dimension_numbers<[1], [0], [0], [1], [0, 0, 1, 1], [], []>} : vector<8x32xf32>, vector<32x96xf32>, vector<8x96xf32> -> vector<8x96xf32>
    %294 = arith.addf %293, %259 : vector<8x96xf32>
    %295 = vector.extract_strided_slice %292 {offsets = [0, 0], sizes = [8, 32], strides = [1, 1]} : vector<8x96xf32> to vector<8x32xf32>
    %296 = vector.extract_strided_slice %294 {offsets = [0, 0], sizes = [8, 32], strides = [1, 1]} : vector<8x96xf32> to vector<8x32xf32>
    %297 = arith.addf %295, %296 : vector<8x32xf32>
    %298 = arith.negf %297 : vector<8x32xf32>
    %299 = math.exp %298 : vector<8x32xf32>
    %cst_91 = arith.constant 1.000000e+00 : f32
    %300 = vector.broadcast %cst_91 : f32 to vector<8x32xf32>
    %301 = arith.addf %300, %299 : vector<8x32xf32>
    %302 = arith.divf %300, %301 : vector<8x32xf32>
    %303 = vector.extract_strided_slice %292 {offsets = [0, 32], sizes = [8, 32], strides = [1, 1]} : vector<8x96xf32> to vector<8x32xf32>
    %304 = vector.extract_strided_slice %294 {offsets = [0, 32], sizes = [8, 32], strides = [1, 1]} : vector<8x96xf32> to vector<8x32xf32>
    %305 = arith.addf %303, %304 : vector<8x32xf32>
    %306 = arith.negf %305 : vector<8x32xf32>
    %307 = math.exp %306 : vector<8x32xf32>
    %cst_92 = arith.constant 1.000000e+00 : f32
    %308 = vector.broadcast %cst_92 : f32 to vector<8x32xf32>
    %309 = arith.addf %308, %307 : vector<8x32xf32>
    %310 = arith.divf %308, %309 : vector<8x32xf32>
    %311 = vector.extract_strided_slice %292 {offsets = [0, 64], sizes = [8, 32], strides = [1, 1]} : vector<8x96xf32> to vector<8x32xf32>
    %312 = vector.extract_strided_slice %294 {offsets = [0, 64], sizes = [8, 32], strides = [1, 1]} : vector<8x96xf32> to vector<8x32xf32>
    %313 = arith.mulf %302, %312 : vector<8x32xf32>
    %314 = arith.addf %311, %313 : vector<8x32xf32>
    %315 = math.tanh %314 : vector<8x32xf32>
    %cst_93 = arith.constant 1.000000e+00 : f32
    %316 = vector.broadcast %cst_93 : f32 to vector<8x32xf32>
    %317 = arith.subf %316, %310 : vector<8x32xf32>
    %318 = arith.mulf %317, %315 : vector<8x32xf32>
    %319 = arith.mulf %310, %290 : vector<8x32xf32>
    %320 = arith.addf %318, %319 : vector<8x32xf32>
    %c8_94 = arith.constant 8 : index
    %c0_95 = arith.constant 0 : index
    %321 = vector.load %arg12[%c8_94, %c0_95] : memref<64x32xf32, #tpu.memory_space<vmem>>, vector<8x32xf32>
    tpu.vector_store %arg12[%c8_94, %c0_95], %320 {strides = array<i32>} : memref<64x32xf32, #tpu.memory_space<vmem>>, vector<8x32xf32>,
    %c16_96 = arith.constant 16 : index
    %c0_97 = arith.constant 0 : index
    %322 = vector.load %arg13[%c16_96, %c0_97] : memref<64x96xf32, #tpu.memory_space<vmem>>, vector<8x96xf32>
    %cst_98 = arith.constant dense<0.000000e+00> : vector<8x96xf32>
    %323 = tpu.matmul %320, %256, %cst_98 {dimension_numbers = #tpu.dot_dimension_numbers<[1], [0], [0], [1], [0, 0, 1, 1], [], []>} : vector<8x32xf32>, vector<32x96xf32>, vector<8x96xf32> -> vector<8x96xf32>
    %324 = arith.addf %323, %259 : vector<8x96xf32>
    %325 = vector.extract_strided_slice %322 {offsets = [0, 0], sizes = [8, 32], strides = [1, 1]} : vector<8x96xf32> to vector<8x32xf32>
    %326 = vector.extract_strided_slice %324 {offsets = [0, 0], sizes = [8, 32], strides = [1, 1]} : vector<8x96xf32> to vector<8x32xf32>
    %327 = arith.addf %325, %326 : vector<8x32xf32>
    %328 = arith.negf %327 : vector<8x32xf32>
    %329 = math.exp %328 : vector<8x32xf32>
    %cst_99 = arith.constant 1.000000e+00 : f32
    %330 = vector.broadcast %cst_99 : f32 to vector<8x32xf32>
    %331 = arith.addf %330, %329 : vector<8x32xf32>
    %332 = arith.divf %330, %331 : vector<8x32xf32>
    %333 = vector.extract_strided_slice %322 {offsets = [0, 32], sizes = [8, 32], strides = [1, 1]} : vector<8x96xf32> to vector<8x32xf32>
    %334 = vector.extract_strided_slice %324 {offsets = [0, 32], sizes = [8, 32], strides = [1, 1]} : vector<8x96xf32> to vector<8x32xf32>
    %335 = arith.addf %333, %334 : vector<8x32xf32>
    %336 = arith.negf %335 : vector<8x32xf32>
    %337 = math.exp %336 : vector<8x32xf32>
    %cst_100 = arith.constant 1.000000e+00 : f32
    %338 = vector.broadcast %cst_100 : f32 to vector<8x32xf32>
    %339 = arith.addf %338, %337 : vector<8x32xf32>
    %340 = arith.divf %338, %339 : vector<8x32xf32>
    %341 = vector.extract_strided_slice %322 {offsets = [0, 64], sizes = [8, 32], strides = [1, 1]} : vector<8x96xf32> to vector<8x32xf32>
    %342 = vector.extract_strided_slice %324 {offsets = [0, 64], sizes = [8, 32], strides = [1, 1]} : vector<8x96xf32> to vector<8x32xf32>
    %343 = arith.mulf %332, %342 : vector<8x32xf32>
    %344 = arith.addf %341, %343 : vector<8x32xf32>
    %345 = math.tanh %344 : vector<8x32xf32>
    %cst_101 = arith.constant 1.000000e+00 : f32
    %346 = vector.broadcast %cst_101 : f32 to vector<8x32xf32>
    %347 = arith.subf %346, %340 : vector<8x32xf32>
    %348 = arith.mulf %347, %345 : vector<8x32xf32>
    %349 = arith.mulf %340, %320 : vector<8x32xf32>
    %350 = arith.addf %348, %349 : vector<8x32xf32>
    %c16_102 = arith.constant 16 : index
    %c0_103 = arith.constant 0 : index
    %351 = vector.load %arg12[%c16_102, %c0_103] : memref<64x32xf32, #tpu.memory_space<vmem>>, vector<8x32xf32>
    tpu.vector_store %arg12[%c16_102, %c0_103], %350 {strides = array<i32>} : memref<64x32xf32, #tpu.memory_space<vmem>>, vector<8x32xf32>,
    %c24_104 = arith.constant 24 : index
    %c0_105 = arith.constant 0 : index
    %352 = vector.load %arg13[%c24_104, %c0_105] : memref<64x96xf32, #tpu.memory_space<vmem>>, vector<8x96xf32>
    %cst_106 = arith.constant dense<0.000000e+00> : vector<8x96xf32>
    %353 = tpu.matmul %350, %256, %cst_106 {dimension_numbers = #tpu.dot_dimension_numbers<[1], [0], [0], [1], [0, 0, 1, 1], [], []>} : vector<8x32xf32>, vector<32x96xf32>, vector<8x96xf32> -> vector<8x96xf32>
    %354 = arith.addf %353, %259 : vector<8x96xf32>
    %355 = vector.extract_strided_slice %352 {offsets = [0, 0], sizes = [8, 32], strides = [1, 1]} : vector<8x96xf32> to vector<8x32xf32>
    %356 = vector.extract_strided_slice %354 {offsets = [0, 0], sizes = [8, 32], strides = [1, 1]} : vector<8x96xf32> to vector<8x32xf32>
    %357 = arith.addf %355, %356 : vector<8x32xf32>
    %358 = arith.negf %357 : vector<8x32xf32>
    %359 = math.exp %358 : vector<8x32xf32>
    %cst_107 = arith.constant 1.000000e+00 : f32
    %360 = vector.broadcast %cst_107 : f32 to vector<8x32xf32>
    %361 = arith.addf %360, %359 : vector<8x32xf32>
    %362 = arith.divf %360, %361 : vector<8x32xf32>
    %363 = vector.extract_strided_slice %352 {offsets = [0, 32], sizes = [8, 32], strides = [1, 1]} : vector<8x96xf32> to vector<8x32xf32>
    %364 = vector.extract_strided_slice %354 {offsets = [0, 32], sizes = [8, 32], strides = [1, 1]} : vector<8x96xf32> to vector<8x32xf32>
    %365 = arith.addf %363, %364 : vector<8x32xf32>
    %366 = arith.negf %365 : vector<8x32xf32>
    %367 = math.exp %366 : vector<8x32xf32>
    %cst_108 = arith.constant 1.000000e+00 : f32
    %368 = vector.broadcast %cst_108 : f32 to vector<8x32xf32>
    %369 = arith.addf %368, %367 : vector<8x32xf32>
    %370 = arith.divf %368, %369 : vector<8x32xf32>
    %371 = vector.extract_strided_slice %352 {offsets = [0, 64], sizes = [8, 32], strides = [1, 1]} : vector<8x96xf32> to vector<8x32xf32>
    %372 = vector.extract_strided_slice %354 {offsets = [0, 64], sizes = [8, 32], strides = [1, 1]} : vector<8x96xf32> to vector<8x32xf32>
    %373 = arith.mulf %362, %372 : vector<8x32xf32>
    %374 = arith.addf %371, %373 : vector<8x32xf32>
    %375 = math.tanh %374 : vector<8x32xf32>
    %cst_109 = arith.constant 1.000000e+00 : f32
    %376 = vector.broadcast %cst_109 : f32 to vector<8x32xf32>
    %377 = arith.subf %376, %370 : vector<8x32xf32>
    %378 = arith.mulf %377, %375 : vector<8x32xf32>
    %379 = arith.mulf %370, %350 : vector<8x32xf32>
    %380 = arith.addf %378, %379 : vector<8x32xf32>
    %c24_110 = arith.constant 24 : index
    %c0_111 = arith.constant 0 : index
    %381 = vector.load %arg12[%c24_110, %c0_111] : memref<64x32xf32, #tpu.memory_space<vmem>>, vector<8x32xf32>
    tpu.vector_store %arg12[%c24_110, %c0_111], %380 {strides = array<i32>} : memref<64x32xf32, #tpu.memory_space<vmem>>, vector<8x32xf32>,
    %c32_112 = arith.constant 32 : index
    %c0_113 = arith.constant 0 : index
    %382 = vector.load %arg13[%c32_112, %c0_113] : memref<64x96xf32, #tpu.memory_space<vmem>>, vector<8x96xf32>
    %cst_114 = arith.constant dense<0.000000e+00> : vector<8x96xf32>
    %383 = tpu.matmul %380, %256, %cst_114 {dimension_numbers = #tpu.dot_dimension_numbers<[1], [0], [0], [1], [0, 0, 1, 1], [], []>} : vector<8x32xf32>, vector<32x96xf32>, vector<8x96xf32> -> vector<8x96xf32>
    %384 = arith.addf %383, %259 : vector<8x96xf32>
    %385 = vector.extract_strided_slice %382 {offsets = [0, 0], sizes = [8, 32], strides = [1, 1]} : vector<8x96xf32> to vector<8x32xf32>
    %386 = vector.extract_strided_slice %384 {offsets = [0, 0], sizes = [8, 32], strides = [1, 1]} : vector<8x96xf32> to vector<8x32xf32>
    %387 = arith.addf %385, %386 : vector<8x32xf32>
    %388 = arith.negf %387 : vector<8x32xf32>
    %389 = math.exp %388 : vector<8x32xf32>
    %cst_115 = arith.constant 1.000000e+00 : f32
    %390 = vector.broadcast %cst_115 : f32 to vector<8x32xf32>
    %391 = arith.addf %390, %389 : vector<8x32xf32>
    %392 = arith.divf %390, %391 : vector<8x32xf32>
    %393 = vector.extract_strided_slice %382 {offsets = [0, 32], sizes = [8, 32], strides = [1, 1]} : vector<8x96xf32> to vector<8x32xf32>
    %394 = vector.extract_strided_slice %384 {offsets = [0, 32], sizes = [8, 32], strides = [1, 1]} : vector<8x96xf32> to vector<8x32xf32>
    %395 = arith.addf %393, %394 : vector<8x32xf32>
    %396 = arith.negf %395 : vector<8x32xf32>
    %397 = math.exp %396 : vector<8x32xf32>
    %cst_116 = arith.constant 1.000000e+00 : f32
    %398 = vector.broadcast %cst_116 : f32 to vector<8x32xf32>
    %399 = arith.addf %398, %397 : vector<8x32xf32>
    %400 = arith.divf %398, %399 : vector<8x32xf32>
    %401 = vector.extract_strided_slice %382 {offsets = [0, 64], sizes = [8, 32], strides = [1, 1]} : vector<8x96xf32> to vector<8x32xf32>
    %402 = vector.extract_strided_slice %384 {offsets = [0, 64], sizes = [8, 32], strides = [1, 1]} : vector<8x96xf32> to vector<8x32xf32>
    %403 = arith.mulf %392, %402 : vector<8x32xf32>
    %404 = arith.addf %401, %403 : vector<8x32xf32>
    %405 = math.tanh %404 : vector<8x32xf32>
    %cst_117 = arith.constant 1.000000e+00 : f32
    %406 = vector.broadcast %cst_117 : f32 to vector<8x32xf32>
    %407 = arith.subf %406, %400 : vector<8x32xf32>
    %408 = arith.mulf %407, %405 : vector<8x32xf32>
    %409 = arith.mulf %400, %380 : vector<8x32xf32>
    %410 = arith.addf %408, %409 : vector<8x32xf32>
    %c32_118 = arith.constant 32 : index
    %c0_119 = arith.constant 0 : index
    %411 = vector.load %arg12[%c32_118, %c0_119] : memref<64x32xf32, #tpu.memory_space<vmem>>, vector<8x32xf32>
    tpu.vector_store %arg12[%c32_118, %c0_119], %410 {strides = array<i32>} : memref<64x32xf32, #tpu.memory_space<vmem>>, vector<8x32xf32>,
    %c40_120 = arith.constant 40 : index
    %c0_121 = arith.constant 0 : index
    %412 = vector.load %arg13[%c40_120, %c0_121] : memref<64x96xf32, #tpu.memory_space<vmem>>, vector<8x96xf32>
    %cst_122 = arith.constant dense<0.000000e+00> : vector<8x96xf32>
    %413 = tpu.matmul %410, %256, %cst_122 {dimension_numbers = #tpu.dot_dimension_numbers<[1], [0], [0], [1], [0, 0, 1, 1], [], []>} : vector<8x32xf32>, vector<32x96xf32>, vector<8x96xf32> -> vector<8x96xf32>
    %414 = arith.addf %413, %259 : vector<8x96xf32>
    %415 = vector.extract_strided_slice %412 {offsets = [0, 0], sizes = [8, 32], strides = [1, 1]} : vector<8x96xf32> to vector<8x32xf32>
    %416 = vector.extract_strided_slice %414 {offsets = [0, 0], sizes = [8, 32], strides = [1, 1]} : vector<8x96xf32> to vector<8x32xf32>
    %417 = arith.addf %415, %416 : vector<8x32xf32>
    %418 = arith.negf %417 : vector<8x32xf32>
    %419 = math.exp %418 : vector<8x32xf32>
    %cst_123 = arith.constant 1.000000e+00 : f32
    %420 = vector.broadcast %cst_123 : f32 to vector<8x32xf32>
    %421 = arith.addf %420, %419 : vector<8x32xf32>
    %422 = arith.divf %420, %421 : vector<8x32xf32>
    %423 = vector.extract_strided_slice %412 {offsets = [0, 32], sizes = [8, 32], strides = [1, 1]} : vector<8x96xf32> to vector<8x32xf32>
    %424 = vector.extract_strided_slice %414 {offsets = [0, 32], sizes = [8, 32], strides = [1, 1]} : vector<8x96xf32> to vector<8x32xf32>
    %425 = arith.addf %423, %424 : vector<8x32xf32>
    %426 = arith.negf %425 : vector<8x32xf32>
    %427 = math.exp %426 : vector<8x32xf32>
    %cst_124 = arith.constant 1.000000e+00 : f32
    %428 = vector.broadcast %cst_124 : f32 to vector<8x32xf32>
    %429 = arith.addf %428, %427 : vector<8x32xf32>
    %430 = arith.divf %428, %429 : vector<8x32xf32>
    %431 = vector.extract_strided_slice %412 {offsets = [0, 64], sizes = [8, 32], strides = [1, 1]} : vector<8x96xf32> to vector<8x32xf32>
    %432 = vector.extract_strided_slice %414 {offsets = [0, 64], sizes = [8, 32], strides = [1, 1]} : vector<8x96xf32> to vector<8x32xf32>
    %433 = arith.mulf %422, %432 : vector<8x32xf32>
    %434 = arith.addf %431, %433 : vector<8x32xf32>
    %435 = math.tanh %434 : vector<8x32xf32>
    %cst_125 = arith.constant 1.000000e+00 : f32
    %436 = vector.broadcast %cst_125 : f32 to vector<8x32xf32>
    %437 = arith.subf %436, %430 : vector<8x32xf32>
    %438 = arith.mulf %437, %435 : vector<8x32xf32>
    %439 = arith.mulf %430, %410 : vector<8x32xf32>
    %440 = arith.addf %438, %439 : vector<8x32xf32>
    %c40_126 = arith.constant 40 : index
    %c0_127 = arith.constant 0 : index
    %441 = vector.load %arg12[%c40_126, %c0_127] : memref<64x32xf32, #tpu.memory_space<vmem>>, vector<8x32xf32>
    tpu.vector_store %arg12[%c40_126, %c0_127], %440 {strides = array<i32>} : memref<64x32xf32, #tpu.memory_space<vmem>>, vector<8x32xf32>,
    %c48_128 = arith.constant 48 : index
    %c0_129 = arith.constant 0 : index
    %442 = vector.load %arg13[%c48_128, %c0_129] : memref<64x96xf32, #tpu.memory_space<vmem>>, vector<8x96xf32>
    %cst_130 = arith.constant dense<0.000000e+00> : vector<8x96xf32>
    %443 = tpu.matmul %440, %256, %cst_130 {dimension_numbers = #tpu.dot_dimension_numbers<[1], [0], [0], [1], [0, 0, 1, 1], [], []>} : vector<8x32xf32>, vector<32x96xf32>, vector<8x96xf32> -> vector<8x96xf32>
    %444 = arith.addf %443, %259 : vector<8x96xf32>
    %445 = vector.extract_strided_slice %442 {offsets = [0, 0], sizes = [8, 32], strides = [1, 1]} : vector<8x96xf32> to vector<8x32xf32>
    %446 = vector.extract_strided_slice %444 {offsets = [0, 0], sizes = [8, 32], strides = [1, 1]} : vector<8x96xf32> to vector<8x32xf32>
    %447 = arith.addf %445, %446 : vector<8x32xf32>
    %448 = arith.negf %447 : vector<8x32xf32>
    %449 = math.exp %448 : vector<8x32xf32>
    %cst_131 = arith.constant 1.000000e+00 : f32
    %450 = vector.broadcast %cst_131 : f32 to vector<8x32xf32>
    %451 = arith.addf %450, %449 : vector<8x32xf32>
    %452 = arith.divf %450, %451 : vector<8x32xf32>
    %453 = vector.extract_strided_slice %442 {offsets = [0, 32], sizes = [8, 32], strides = [1, 1]} : vector<8x96xf32> to vector<8x32xf32>
    %454 = vector.extract_strided_slice %444 {offsets = [0, 32], sizes = [8, 32], strides = [1, 1]} : vector<8x96xf32> to vector<8x32xf32>
    %455 = arith.addf %453, %454 : vector<8x32xf32>
    %456 = arith.negf %455 : vector<8x32xf32>
    %457 = math.exp %456 : vector<8x32xf32>
    %cst_132 = arith.constant 1.000000e+00 : f32
    %458 = vector.broadcast %cst_132 : f32 to vector<8x32xf32>
    %459 = arith.addf %458, %457 : vector<8x32xf32>
    %460 = arith.divf %458, %459 : vector<8x32xf32>
    %461 = vector.extract_strided_slice %442 {offsets = [0, 64], sizes = [8, 32], strides = [1, 1]} : vector<8x96xf32> to vector<8x32xf32>
    %462 = vector.extract_strided_slice %444 {offsets = [0, 64], sizes = [8, 32], strides = [1, 1]} : vector<8x96xf32> to vector<8x32xf32>
    %463 = arith.mulf %452, %462 : vector<8x32xf32>
    %464 = arith.addf %461, %463 : vector<8x32xf32>
    %465 = math.tanh %464 : vector<8x32xf32>
    %cst_133 = arith.constant 1.000000e+00 : f32
    %466 = vector.broadcast %cst_133 : f32 to vector<8x32xf32>
    %467 = arith.subf %466, %460 : vector<8x32xf32>
    %468 = arith.mulf %467, %465 : vector<8x32xf32>
    %469 = arith.mulf %460, %440 : vector<8x32xf32>
    %470 = arith.addf %468, %469 : vector<8x32xf32>
    %c48_134 = arith.constant 48 : index
    %c0_135 = arith.constant 0 : index
    %471 = vector.load %arg12[%c48_134, %c0_135] : memref<64x32xf32, #tpu.memory_space<vmem>>, vector<8x32xf32>
    tpu.vector_store %arg12[%c48_134, %c0_135], %470 {strides = array<i32>} : memref<64x32xf32, #tpu.memory_space<vmem>>, vector<8x32xf32>,
    %c56_136 = arith.constant 56 : index
    %c0_137 = arith.constant 0 : index
    %472 = vector.load %arg13[%c56_136, %c0_137] : memref<64x96xf32, #tpu.memory_space<vmem>>, vector<8x96xf32>
    %cst_138 = arith.constant dense<0.000000e+00> : vector<8x96xf32>
    %473 = tpu.matmul %470, %256, %cst_138 {dimension_numbers = #tpu.dot_dimension_numbers<[1], [0], [0], [1], [0, 0, 1, 1], [], []>} : vector<8x32xf32>, vector<32x96xf32>, vector<8x96xf32> -> vector<8x96xf32>
    %474 = arith.addf %473, %259 : vector<8x96xf32>
    %475 = vector.extract_strided_slice %472 {offsets = [0, 0], sizes = [8, 32], strides = [1, 1]} : vector<8x96xf32> to vector<8x32xf32>
    %476 = vector.extract_strided_slice %474 {offsets = [0, 0], sizes = [8, 32], strides = [1, 1]} : vector<8x96xf32> to vector<8x32xf32>
    %477 = arith.addf %475, %476 : vector<8x32xf32>
    %478 = arith.negf %477 : vector<8x32xf32>
    %479 = math.exp %478 : vector<8x32xf32>
    %cst_139 = arith.constant 1.000000e+00 : f32
    %480 = vector.broadcast %cst_139 : f32 to vector<8x32xf32>
    %481 = arith.addf %480, %479 : vector<8x32xf32>
    %482 = arith.divf %480, %481 : vector<8x32xf32>
    %483 = vector.extract_strided_slice %472 {offsets = [0, 32], sizes = [8, 32], strides = [1, 1]} : vector<8x96xf32> to vector<8x32xf32>
    %484 = vector.extract_strided_slice %474 {offsets = [0, 32], sizes = [8, 32], strides = [1, 1]} : vector<8x96xf32> to vector<8x32xf32>
    %485 = arith.addf %483, %484 : vector<8x32xf32>
    %486 = arith.negf %485 : vector<8x32xf32>
    %487 = math.exp %486 : vector<8x32xf32>
    %cst_140 = arith.constant 1.000000e+00 : f32
    %488 = vector.broadcast %cst_140 : f32 to vector<8x32xf32>
    %489 = arith.addf %488, %487 : vector<8x32xf32>
    %490 = arith.divf %488, %489 : vector<8x32xf32>
    %491 = vector.extract_strided_slice %472 {offsets = [0, 64], sizes = [8, 32], strides = [1, 1]} : vector<8x96xf32> to vector<8x32xf32>
    %492 = vector.extract_strided_slice %474 {offsets = [0, 64], sizes = [8, 32], strides = [1, 1]} : vector<8x96xf32> to vector<8x32xf32>
    %493 = arith.mulf %482, %492 : vector<8x32xf32>
    %494 = arith.addf %491, %493 : vector<8x32xf32>
    %495 = math.tanh %494 : vector<8x32xf32>
    %cst_141 = arith.constant 1.000000e+00 : f32
    %496 = vector.broadcast %cst_141 : f32 to vector<8x32xf32>
    %497 = arith.subf %496, %490 : vector<8x32xf32>
    %498 = arith.mulf %497, %495 : vector<8x32xf32>
    %499 = arith.mulf %490, %470 : vector<8x32xf32>
    %500 = arith.addf %498, %499 : vector<8x32xf32>
    %c56_142 = arith.constant 56 : index
    %c0_143 = arith.constant 0 : index
    %501 = vector.load %arg12[%c56_142, %c0_143] : memref<64x32xf32, #tpu.memory_space<vmem>>, vector<8x32xf32>
    tpu.vector_store %arg12[%c56_142, %c0_143], %500 {strides = array<i32>} : memref<64x32xf32, #tpu.memory_space<vmem>>, vector<8x32xf32>,
    %c1_144 = arith.constant 1 : index
    %c0_145 = arith.constant 0 : index
    %c0_146 = arith.constant 0 : index
    %502 = vector.load %arg11[%c1_144, %c0_145, %c0_146] : memref<2x8x32xf32, #tpu.memory_space<vmem>>, vector<1x8x32xf32>
    %503 = vector.shape_cast %502 : vector<1x8x32xf32> to vector<8x32xf32>
    %504 = vector.shape_cast %500 : vector<8x32xf32> to vector<1x8x32xf32>
    tpu.vector_store %arg11[%c1_144, %c0_145, %c0_146], %504 {strides = array<i32>} : memref<2x8x32xf32, #tpu.memory_space<vmem>>, vector<1x8x32xf32>,
    %cst_147 = arith.constant 0.000000e+00 : f32
    %505 = vector.broadcast %cst_147 : f32 to vector<8x32xf32>
    %506 = arith.maximumf %500, %505 : vector<8x32xf32>
    %c0_148 = arith.constant 0 : index
    %c0_149 = arith.constant 0 : index
    %507 = vector.load %arg8[%c0_148, %c0_149] : memref<32x1xf32, #tpu.memory_space<vmem>>, vector<32x1xf32>
    %cst_150 = arith.constant dense<0.000000e+00> : vector<8x1xf32>
    %508 = tpu.matmul %506, %507, %cst_150 {dimension_numbers = #tpu.dot_dimension_numbers<[1], [0], [0], [1], [0, 0, 1, 1], [], []>} : vector<8x32xf32>, vector<32x1xf32>, vector<8x1xf32> -> vector<8x1xf32>
    %c0_151 = arith.constant 0 : index
    %c0_152 = arith.constant 0 : index
    %509 = vector.load %arg9[%c0_151, %c0_152] : memref<1x1xf32, #tpu.memory_space<vmem>>, vector<1x1xf32>
    %510 = vector.broadcast %509 : vector<1x1xf32> to vector<8x1xf32>
    %511 = arith.addf %508, %510 : vector<8x1xf32>
    %c0_153 = arith.constant 0 : index
    %c0_154 = arith.constant 0 : index
    %512 = vector.load %arg10[%c0_153, %c0_154] : memref<8x1xf32, #tpu.memory_space<vmem>>, vector<8x1xf32>
    tpu.vector_store %arg10[%c0_153, %c0_154], %511 {strides = array<i32>} : memref<8x1xf32, #tpu.memory_space<vmem>>, vector<8x1xf32>,
    return
  }
}

</mosaic_0001>

<llo_original>
// kernel: grunet_forward.1
$region0: #{grunet_forward.1}
  #allocation0 [shape = 'u32[]', space=smem, size = 0x4, offset = 0x4, fixed_abs, tag = 'smem constant byte address 0x4 - core index']
  #allocation1 [shape = 'u32[144,128]{1,0:T(1,128)}', space=vmem, size = 0x12000, scoped, tag = 'internal scratch']
  #allocation2 [shape = 'f32[64,32]{1,0:T(8,128)}', space=vmem, size = 0x8000, scoped, tag = 'scratch operand']
  #allocation3 [shape = 'f32[64,96]{1,0:T(8,128)}', space=vmem, size = 0x8000, scoped, tag = 'scratch operand']
  #allocation4 [shape = 'f32[1,1]{1,0:T(1,128)S(1)}', space=vmem, size = 0x200, scoped, tag = 'scoped memory for grunet_forward.1']
  %s0 = inlined_call_operand.vmem [shape: f32[64,96], index: 0, kind: input, shape index: {}]
  %s1 = inlined_call_operand.vmem [shape: f32[2,8,32], index: 1, kind: input, shape index: {}]
  %s2 = inlined_call_operand.vmem [shape: f32[32,96], index: 2, kind: input, shape index: {}]
  %s3 = inlined_call_operand.vmem [shape: f32[1,96], index: 3, kind: input, shape index: {}]
  %s4 = inlined_call_operand.vmem [shape: f32[32,96], index: 4, kind: input, shape index: {}]
  %s5 = inlined_call_operand.vmem [shape: f32[1,96], index: 5, kind: input, shape index: {}]
  %s6 = inlined_call_operand.vmem [shape: f32[32,96], index: 6, kind: input, shape index: {}]
  %s7 = inlined_call_operand.vmem [shape: f32[1,96], index: 7, kind: input, shape index: {}]
  %s8 = inlined_call_operand.vmem [shape: f32[32,1], index: 8, kind: input, shape index: {}]
  %s9 = inlined_call_operand.<no memory space> [shape: f32[1,1], index: 9, kind: input, shape index: {}]
  %s10 = inlined_call_operand.vmem [shape: f32[8,1], index: 10, kind: output, shape index: {0}]
  %s11 = inlined_call_operand.vmem [shape: f32[2,8,32], index: 11, kind: output, shape index: {1}]
  %12 = xla_tuple %s10, %s11
  %s13 = sld [smem:[#allocation0]]
  $region58: #{grunet_forward.1} parent=0
    _
  %s15 = ssub.s32 1, %s13
  %s16 = scalar_select 0, %s15, %s13
  %v17 = vstv %s9
  %18 = vst [vmem:[#allocation4] sm:$0x1] %v17
  // Predicated region
  $region2: #{grunet_forward.1} parent=0 // pred_check
    _
  $region3: #{grunet_forward.1} parent=0 // pred_check_branch
    %20 = sbr.rel (0) target = $region5
  $region4: #{grunet_forward.1} parent=0 // pred_region
    _
  $region5: #{grunet_forward.1} parent=0 // pred_fallthru
    _
  // Predicated region
  $region6: #{grunet_forward.1} parent=0 // pred_check
    _
  $region7: #{grunet_forward.1} parent=0 // pred_check_branch
    %22 = sbr.rel (0) target = $region9
  $region8: #{grunet_forward.1} parent=0 // pred_region
    _
  $region9: #{grunet_forward.1} parent=0 // pred_fallthru
    _
  // Predicated region
  $region10: #{grunet_forward.1} parent=0 // pred_check
    _
  $region11: #{grunet_forward.1} parent=0 // pred_check_branch
    %24 = sbr.rel (0) target = $region13
  $region12: #{grunet_forward.1} parent=0 // pred_region
    _
  $region13: #{grunet_forward.1} parent=0 // pred_fallthru
    _
  // Predicated region
  $region14: #{grunet_forward.1} parent=0 // pred_check
    _
  $region15: #{grunet_forward.1} parent=0 // pred_check_branch
    %26 = sbr.rel (0) target = $region17
  $region16: #{grunet_forward.1} parent=0 // pred_region
    _
  $region17: #{grunet_forward.1} parent=0 // pred_fallthru
    _
  // Predicated region
  $region18: #{grunet_forward.1} parent=0 // pred_check
    _
  $region19: #{grunet_forward.1} parent=0 // pred_check_branch
    %28 = sbr.rel (0) target = $region21
  $region20: #{grunet_forward.1} parent=0 // pred_region
    _
  $region21: #{grunet_forward.1} parent=0 // pred_fallthru
    _
  // Predicated region
  $region22: #{grunet_forward.1} parent=0 // pred_check
    _
  $region23: #{grunet_forward.1} parent=0 // pred_check_branch
    %30 = sbr.rel (0) target = $region25
  $region24: #{grunet_forward.1} parent=0 // pred_region
    _
  $region25: #{grunet_forward.1} parent=0 // pred_fallthru
    _
  // Predicated region
  $region26: #{grunet_forward.1} parent=0 // pred_check
    _
  $region27: #{grunet_forward.1} parent=0 // pred_check_branch
    %32 = sbr.rel (0) target = $region29
  $region28: #{grunet_forward.1} parent=0 // pred_region
    _
  $region29: #{grunet_forward.1} parent=0 // pred_fallthru
    _
  // Predicated region
  $region30: #{grunet_forward.1} parent=0 // pred_check
    _
  $region31: #{grunet_forward.1} parent=0 // pred_check_branch
    %34 = sbr.rel (0) target = $region33
  $region32: #{grunet_forward.1} parent=0 // pred_region
    _
  $region33: #{grunet_forward.1} parent=0 // pred_fallthru
    _
  // Predicated region
  $region34: #{grunet_forward.1} parent=0 // pred_check
    _
  $region35: #{grunet_forward.1} parent=0 // pred_check_branch
    %36 = sbr.rel (0) target = $region37
  $region36: #{grunet_forward.1} parent=0 // pred_region
    _
  $region37: #{grunet_forward.1} parent=0 // pred_fallthru
    _
  // Predicated region
  $region38: #{grunet_forward.1} parent=0 // pred_check
    _
  $region39: #{grunet_forward.1} parent=0 // pred_check_branch
    %38 = sbr.rel (0) target = $region41
  $region40: #{grunet_forward.1} parent=0 // pred_region
    _
  $region41: #{grunet_forward.1} parent=0 // pred_fallthru
    _
  %v39 = vld [vmem:[%s2] sm:$0xff]
  %v40 = vld [vmem:[%s2 + $0x8] sm:$0xff]
  %v41 = vld [vmem:[%s2 + $0x10] sm:$0xff]
  %v42 = vld [vmem:[%s2 + $0x18] sm:$0xff]
  %v43 = vld [vmem:[%s3] sm:$0x1]
  %v45 = vlaneseq
  %v46 = vshrl.u32 %v45, 7
  %v47 = vsub.s32 0, %v46
  %v48 = vrot.slane %v43, %v47
  %v50 = vld [vmem:[%s1] sm:$0xff]
  %v51 = vld [vmem:[%s0] sm:$0xff]
  %vm52 = vcmask 261120
  %v54 = vsel %vm52, %v50, 0
  %56 = vmatprep.subr.mxu0 0.0
  %57 = vmatpush1.msra.mxu0 %v39
  %58 = vmatprep.subr.mxu0 0.0
  %59 = vmatpush1.msra.mxu0 %v40
  %60 = vmatprep.subr.mxu0 0.0
  %61 = vmatpush1.msra.mxu0 %v41
  %62 = vmatprep.subr.mxu0 0.0
  %63 = vmatpush1.msra.mxu0 %v42
  %64 = vmatprep.subr.mxu0 0.0
  %65 = vmatpush1.msra.mxu0 0.0
  %66 = vmatprep.subr.mxu0 0.0
  %67 = vmatpush1.msra.mxu0 0.0
  %68 = vmatprep.subr.mxu0 0.0
  %69 = vmatpush1.msra.mxu0 0.0
  %70 = vmatprep.subr.mxu0 0.0
  %71 = vmatpush1.msra.mxu0 0.0
  %72 = vmatprep.subr.mxu0 0.0
  %73 = vmatpush1.msra.mxu0 0.0
  %74 = vmatprep.subr.mxu0 0.0
  %75 = vmatpush1.msra.mxu0 0.0
  %76 = vmatprep.subr.mxu0 0.0
  %77 = vmatpush1.msra.mxu0 0.0
  %78 = vmatprep.subr.mxu0 0.0
  %79 = vmatpush1.msra.mxu0 0.0
  %80 = vmatprep.subr.mxu0 0.0
  %81 = vmatpush1.msra.mxu0 0.0
  %82 = vmatprep.subr.mxu0 0.0
  %83 = vmatpush1.msra.mxu0 0.0
  %84 = vmatprep.subr.mxu0 0.0
  %85 = vmatpush1.msra.mxu0 0.0
  %86 = vmatprep.subr.mxu0 0.0
  %87 = vmatpush1.msra.mxu0 0.0
  %88 = vmatprep.subr.mxu0 0.0
  %89 = vmatpush1.msra.mxu0 0.0
  %90 = vmatprep.subr.mxu0 0.0
  %91 = vmatpush1.msra.mxu0 0.0
  %92 = vmatprep.subr.mxu0 0.0
  %93 = vmatpush1.msra.mxu0 0.0
  %94 = vmatprep.subr.mxu0 0.0
  %95 = vmatpush1.msra.mxu0 0.0
  %96 = vmatprep.subr.mxu0 0.0
  %97 = vmatpush1.msra.mxu0 0.0
  %98 = vmatprep.subr.mxu0 0.0
  %99 = vmatpush1.msra.mxu0 0.0
  %100 = vmatprep.subr.mxu0 0.0
  %101 = vmatpush1.msra.mxu0 0.0
  %102 = vmatprep.subr.mxu0 0.0
  %103 = vmatpush1.msra.mxu0 0.0
  %104 = vmatprep.subr.mxu0 0.0
  %105 = vmatpush1.msra.mxu0 0.0
  %106 = vmatprep.subr.mxu0 0.0
  %107 = vmatpush1.msra.mxu0 0.0
  %108 = vmatprep.subr.mxu0 0.0
  %109 = vmatpush1.msra.mxu0 0.0
  %110 = vmatprep.subr.mxu0 0.0
  %111 = vmatpush1.msra.mxu0 0.0
  %112 = vmatprep.subr.mxu0 0.0
  %113 = vmatpush1.msra.mxu0 0.0
  %114 = vmatprep.subr.mxu0 0.0
  %115 = vmatpush1.msra.mxu0 0.0
  %116 = vmatprep.subr.mxu0 0.0
  %117 = vmatpush1.msra.mxu0 0.0
  %118 = vmatprep.subr.mxu0 0.0
  %119 = vmatpush1.msra.mxu0 0.0
  %120 = vmatprep.mubr.f32.mxu0 0.0
  %121 = vmatmul.mubr.f32.gmra.mrb[0].mxu0 %v54
  %v122 = vpop.f32.mrb[0].mxu0
  %v123 = vadd.f32 %v48, %v122
  %v124 = vpop.f32.mrb[0].mxu0
  %125 = vdwg.mxu0
  %v126 = vadd.f32 %v51, %v123
  %v127 = vxor.u32 %v126, 2147483648
  %v128 = vmul.f32 %v127, 1.442695
  %v129 = vpow.pop %v128
  %v130 = vadd.f32 %v129, 1.0
  %v131 = vrcp.pop %v130
  %v132 = vmul.f32 1.0, %v131
  %134 = vrot.lane.b32.xlu0 %v123, 64
  %v135 = vpop.permute.xlu0 %134
  %v137 = vmul.f32 %v132, %v135
  %139 = vrot.lane.b32.xlu0 %v137, 64
  %v140 = vpop.permute.xlu0 %139
  %v142 = vadd.f32 %v51, %v140
  %v143 = vtanh.pop %v142
  %v144 = vsub.f32 1.0, %v132
  %146 = vrot.lane.b32.xlu0 %v143, 96
  %v147 = vpop.permute.xlu0 %146
  %v149 = vmul.f32 %v144, %v147
  %150 = vrot.lane.b32.xlu0 %v50, 32
  %v151 = vpop.permute.xlu0 %150
  %v153 = vmul.f32 %v132, %v151
  %v154 = vadd.f32 %v149, %v153
  %156 = vrot.lane.b32.xlu0 %v154, 96
  %v157 = vpop.permute.xlu0 %156
  %159 = vst.msk [vmem:[#allocation2] sm:$0xff] %vm52, %v157
  %v160 = vld [vmem:[%s0 + $0x8] sm:$0xff]
  %v161 = vsel %vm52, %v157, 0
  %163 = vmatprep.subr.mxu0 0.0
  %164 = vmatpush1.msra.mxu0 %v39
  %165 = vmatprep.subr.mxu0 0.0
  %166 = vmatpush1.msra.mxu0 %v40
  %167 = vmatprep.subr.mxu0 0.0
  %168 = vmatpush1.msra.mxu0 %v41
  %169 = vmatprep.subr.mxu0 0.0
  %170 = vmatpush1.msra.mxu0 %v42
  %171 = vmatprep.subr.mxu0 0.0
  %172 = vmatpush1.msra.mxu0 0.0
  %173 = vmatprep.subr.mxu0 0.0
  %174 = vmatpush1.msra.mxu0 0.0
  %175 = vmatprep.subr.mxu0 0.0
  %176 = vmatpush1.msra.mxu0 0.0
  %177 = vmatprep.subr.mxu0 0.0
  %178 = vmatpush1.msra.mxu0 0.0
  %179 = vmatprep.subr.mxu0 0.0
  %180 = vmatpush1.msra.mxu0 0.0
  %181 = vmatprep.subr.mxu0 0.0
  %182 = vmatpush1.msra.mxu0 0.0
  %183 = vmatprep.subr.mxu0 0.0
  %184 = vmatpush1.msra.mxu0 0.0
  %185 = vmatprep.subr.mxu0 0.0
  %186 = vmatpush1.msra.mxu0 0.0
  %187 = vmatprep.subr.mxu0 0.0
  %188 = vmatpush1.msra.mxu0 0.0
  %189 = vmatprep.subr.mxu0 0.0
  %190 = vmatpush1.msra.mxu0 0.0
  %191 = vmatprep.subr.mxu0 0.0
  %192 = vmatpush1.msra.mxu0 0.0
  %193 = vmatprep.subr.mxu0 0.0
  %194 = vmatpush1.msra.mxu0 0.0
  %195 = vmatprep.subr.mxu0 0.0
  %196 = vmatpush1.msra.mxu0 0.0
  %197 = vmatprep.subr.mxu0 0.0
  %198 = vmatpush1.msra.mxu0 0.0
  %199 = vmatprep.subr.mxu0 0.0
  %200 = vmatpush1.msra.mxu0 0.0
  %201 = vmatprep.subr.mxu0 0.0
  %202 = vmatpush1.msra.mxu0 0.0
  %203 = vmatprep.subr.mxu0 0.0
  %204 = vmatpush1.msra.mxu0 0.0
  %205 = vmatprep.subr.mxu0 0.0
  %206 = vmatpush1.msra.mxu0 0.0
  %207 = vmatprep.subr.mxu0 0.0
  %208 = vmatpush1.msra.mxu0 0.0
  %209 = vmatprep.subr.mxu0 0.0
  %210 = vmatpush1.msra.mxu0 0.0
  %211 = vmatprep.subr.mxu0 0.0
  %212 = vmatpush1.msra.mxu0 0.0
  %213 = vmatprep.subr.mxu0 0.0
  %214 = vmatpush1.msra.mxu0 0.0
  %215 = vmatprep.subr.mxu0 0.0
  %216 = vmatpush1.msra.mxu0 0.0
  %217 = vmatprep.subr.mxu0 0.0
  %218 = vmatpush1.msra.mxu0 0.0
  %219 = vmatprep.subr.mxu0 0.0
  %220 = vmatpush1.msra.mxu0 0.0
  %221 = vmatprep.subr.mxu0 0.0
  %222 = vmatpush1.msra.mxu0 0.0
  %223 = vmatprep.subr.mxu0 0.0
  %224 = vmatpush1.msra.mxu0 0.0
  %225 = vmatprep.subr.mxu0 0.0
  %226 = vmatpush1.msra.mxu0 0.0
  %227 = vmatprep.mubr.f32.mxu0 0.0
  %228 = vmatmul.mubr.f32.gmra.mrb[0].mxu0 %v161
  %v229 = vpop.f32.mrb[0].mxu0
  %v230 = vadd.f32 %v48, %v229
  %v231 = vpop.f32.mrb[0].mxu0
  %232 = vdwg.mxu0
  %v233 = vadd.f32 %v160, %v230
  %v234 = vxor.u32 %v233, 2147483648
  %v235 = vmul.f32 %v234, 1.442695
  %v236 = vpow.pop %v235
  %v237 = vadd.f32 %v236, 1.0
  %v238 = vrcp.pop %v237
  %v239 = vmul.f32 1.0, %v238
  %241 = vrot.lane.b32.xlu0 %v230, 64
  %v242 = vpop.permute.xlu0 %241
  %v244 = vmul.f32 %v239, %v242
  %246 = vrot.lane.b32.xlu0 %v244, 64
  %v247 = vpop.permute.xlu0 %246
  %v249 = vadd.f32 %v160, %v247
  %v250 = vtanh.pop %v249
  %v251 = vsub.f32 1.0, %v239
  %253 = vrot.lane.b32.xlu0 %v250, 96
  %v254 = vpop.permute.xlu0 %253
  %v256 = vmul.f32 %v251, %v254
  %v257 = vmul.f32 %v239, %v154
  %v258 = vadd.f32 %v256, %v257
  %260 = vrot.lane.b32.xlu0 %v258, 96
  %v261 = vpop.permute.xlu0 %260
  %263 = vst.msk [vmem:[#allocation2 + $0x8] sm:$0xff] %vm52, %v261
  %v264 = vld [vmem:[%s0 + $0x10] sm:$0xff]
  %v265 = vsel %vm52, %v261, 0
  %267 = vmatprep.subr.mxu0 0.0
  %268 = vmatpush1.msra.mxu0 %v39
  %269 = vmatprep.subr.mxu0 0.0
  %270 = vmatpush1.msra.mxu0 %v40
  %271 = vmatprep.subr.mxu0 0.0
  %272 = vmatpush1.msra.mxu0 %v41
  %273 = vmatprep.subr.mxu0 0.0
  %274 = vmatpush1.msra.mxu0 %v42
  %275 = vmatprep.subr.mxu0 0.0
  %276 = vmatpush1.msra.mxu0 0.0
  %277 = vmatprep.subr.mxu0 0.0
  %278 = vmatpush1.msra.mxu0 0.0
  %279 = vmatprep.subr.mxu0 0.0
  %280 = vmatpush1.msra.mxu0 0.0
  %281 = vmatprep.subr.mxu0 0.0
  %282 = vmatpush1.msra.mxu0 0.0
  %283 = vmatprep.subr.mxu0 0.0
  %284 = vmatpush1.msra.mxu0 0.0
  %285 = vmatprep.subr.mxu0 0.0
  %286 = vmatpush1.msra.mxu0 0.0
  %287 = vmatprep.subr.mxu0 0.0
  %288 = vmatpush1.msra.mxu0 0.0
  %289 = vmatprep.subr.mxu0 0.0
  %290 = vmatpush1.msra.mxu0 0.0
  %291 = vmatprep.subr.mxu0 0.0
  %292 = vmatpush1.msra.mxu0 0.0
  %293 = vmatprep.subr.mxu0 0.0
  %294 = vmatpush1.msra.mxu0 0.0
  %295 = vmatprep.subr.mxu0 0.0
  %296 = vmatpush1.msra.mxu0 0.0
  %297 = vmatprep.subr.mxu0 0.0
  %298 = vmatpush1.msra.mxu0 0.0
  %299 = vmatprep.subr.mxu0 0.0
  %300 = vmatpush1.msra.mxu0 0.0
  %301 = vmatprep.subr.mxu0 0.0
  %302 = vmatpush1.msra.mxu0 0.0
  %303 = vmatprep.subr.mxu0 0.0
  %304 = vmatpush1.msra.mxu0 0.0
  %305 = vmatprep.subr.mxu0 0.0
  %306 = vmatpush1.msra.mxu0 0.0
  %307 = vmatprep.subr.mxu0 0.0
  %308 = vmatpush1.msra.mxu0 0.0
  %309 = vmatprep.subr.mxu0 0.0
  %310 = vmatpush1.msra.mxu0 0.0
  %311 = vmatprep.subr.mxu0 0.0
  %312 = vmatpush1.msra.mxu0 0.0
  %313 = vmatprep.subr.mxu0 0.0
  %314 = vmatpush1.msra.mxu0 0.0
  %315 = vmatprep.subr.mxu0 0.0
  %316 = vmatpush1.msra.mxu0 0.0
  %317 = vmatprep.subr.mxu0 0.0
  %318 = vmatpush1.msra.mxu0 0.0
  %319 = vmatprep.subr.mxu0 0.0
  %320 = vmatpush1.msra.mxu0 0.0
  %321 = vmatprep.subr.mxu0 0.0
  %322 = vmatpush1.msra.mxu0 0.0
  %323 = vmatprep.subr.mxu0 0.0
  %324 = vmatpush1.msra.mxu0 0.0
  %325 = vmatprep.subr.mxu0 0.0
  %326 = vmatpush1.msra.mxu0 0.0
  %327 = vmatprep.subr.mxu0 0.0
  %328 = vmatpush1.msra.mxu0 0.0
  %329 = vmatprep.subr.mxu0 0.0
  %330 = vmatpush1.msra.mxu0 0.0
  %331 = vmatprep.mubr.f32.mxu0 0.0
  %332 = vmatmul.mubr.f32.gmra.mrb[0].mxu0 %v265
  %v333 = vpop.f32.mrb[0].mxu0
  %v334 = vadd.f32 %v48, %v333
  %v335 = vpop.f32.mrb[0].mxu0
  %336 = vdwg.mxu0
  %v337 = vadd.f32 %v264, %v334
  %v338 = vxor.u32 %v337, 2147483648
  %v339 = vmul.f32 %v338, 1.442695
  %v340 = vpow.pop %v339
  %v341 = vadd.f32 %v340, 1.0
  %v342 = vrcp.pop %v341
  %v343 = vmul.f32 1.0, %v342
  %345 = vrot.lane.b32.xlu0 %v334, 64
  %v346 = vpop.permute.xlu0 %345
  %v348 = vmul.f32 %v343, %v346
  %350 = vrot.lane.b32.xlu0 %v348, 64
  %v351 = vpop.permute.xlu0 %350
  %v353 = vadd.f32 %v264, %v351
  %v354 = vtanh.pop %v353
  %v355 = vsub.f32 1.0, %v343
  %357 = vrot.lane.b32.xlu0 %v354, 96
  %v358 = vpop.permute.xlu0 %357
  %v360 = vmul.f32 %v355, %v358
  %v361 = vmul.f32 %v343, %v258
  %v362 = vadd.f32 %v360, %v361
  %364 = vrot.lane.b32.xlu0 %v362, 96
  %v365 = vpop.permute.xlu0 %364
  %367 = vst.msk [vmem:[#allocation2 + $0x10] sm:$0xff] %vm52, %v365
  %v368 = vld [vmem:[%s0 + $0x18] sm:$0xff]
  %v369 = vsel %vm52, %v365, 0
  %371 = vmatprep.subr.mxu0 0.0
  %372 = vmatpush1.msra.mxu0 %v39
  %373 = vmatprep.subr.mxu0 0.0
  %374 = vmatpush1.msra.mxu0 %v40
  %375 = vmatprep.subr.mxu0 0.0
  %376 = vmatpush1.msra.mxu0 %v41
  %377 = vmatprep.subr.mxu0 0.0
  %378 = vmatpush1.msra.mxu0 %v42
  %379 = vmatprep.subr.mxu0 0.0
  %380 = vmatpush1.msra.mxu0 0.0
  %381 = vmatprep.subr.mxu0 0.0
  %382 = vmatpush1.msra.mxu0 0.0
  %383 = vmatprep.subr.mxu0 0.0
  %384 = vmatpush1.msra.mxu0 0.0
  %385 = vmatprep.subr.mxu0 0.0
  %386 = vmatpush1.msra.mxu0 0.0
  %387 = vmatprep.subr.mxu0 0.0
  %388 = vmatpush1.msra.mxu0 0.0
  %389 = vmatprep.subr.mxu0 0.0
  %390 = vmatpush1.msra.mxu0 0.0
  %391 = vmatprep.subr.mxu0 0.0
  %392 = vmatpush1.msra.mxu0 0.0
  %393 = vmatprep.subr.mxu0 0.0
  %394 = vmatpush1.msra.mxu0 0.0
  %395 = vmatprep.subr.mxu0 0.0
  %396 = vmatpush1.msra.mxu0 0.0
  %397 = vmatprep.subr.mxu0 0.0
  %398 = vmatpush1.msra.mxu0 0.0
  %399 = vmatprep.subr.mxu0 0.0
  %400 = vmatpush1.msra.mxu0 0.0
  %401 = vmatprep.subr.mxu0 0.0
  %402 = vmatpush1.msra.mxu0 0.0
  %403 = vmatprep.subr.mxu0 0.0
  %404 = vmatpush1.msra.mxu0 0.0
  %405 = vmatprep.subr.mxu0 0.0
  %406 = vmatpush1.msra.mxu0 0.0
  %407 = vmatprep.subr.mxu0 0.0
  %408 = vmatpush1.msra.mxu0 0.0
  %409 = vmatprep.subr.mxu0 0.0
  %410 = vmatpush1.msra.mxu0 0.0
  %411 = vmatprep.subr.mxu0 0.0
  %412 = vmatpush1.msra.mxu0 0.0
  %413 = vmatprep.subr.mxu0 0.0
  %414 = vmatpush1.msra.mxu0 0.0
  %415 = vmatprep.subr.mxu0 0.0
  %416 = vmatpush1.msra.mxu0 0.0
  %417 = vmatprep.subr.mxu0 0.0
  %418 = vmatpush1.msra.mxu0 0.0
  %419 = vmatprep.subr.mxu0 0.0
  %420 = vmatpush1.msra.mxu0 0.0
  %421 = vmatprep.subr.mxu0 0.0
  %422 = vmatpush1.msra.mxu0 0.0
  %423 = vmatprep.subr.mxu0 0.0
  %424 = vmatpush1.msra.mxu0 0.0
  %425 = vmatprep.subr.mxu0 0.0
  %426 = vmatpush1.msra.mxu0 0.0
  %427 = vmatprep.subr.mxu0 0.0
  %428 = vmatpush1.msra.mxu0 0.0
  %429 = vmatprep.subr.mxu0 0.0
  %430 = vmatpush1.msra.mxu0 0.0
  %431 = vmatprep.subr.mxu0 0.0
  %432 = vmatpush1.msra.mxu0 0.0
  %433 = vmatprep.subr.mxu0 0.0
  %434 = vmatpush1.msra.mxu0 0.0
  %435 = vmatprep.mubr.f32.mxu0 0.0
  %436 = vmatmul.mubr.f32.gmra.mrb[0].mxu0 %v369
  %v437 = vpop.f32.mrb[0].mxu0
  %v438 = vadd.f32 %v48, %v437
  %v439 = vpop.f32.mrb[0].mxu0
  %440 = vdwg.mxu0
  %v441 = vadd.f32 %v368, %v438
  %v442 = vxor.u32 %v441, 2147483648
  %v443 = vmul.f32 %v442, 1.442695
  %v444 = vpow.pop %v443
  %v445 = vadd.f32 %v444, 1.0
  %v446 = vrcp.pop %v445
  %v447 = vmul.f32 1.0, %v446
  %449 = vrot.lane.b32.xlu0 %v438, 64
  %v450 = vpop.permute.xlu0 %449
  %v452 = vmul.f32 %v447, %v450
  %454 = vrot.lane.b32.xlu0 %v452, 64
  %v455 = vpop.permute.xlu0 %454
  %v457 = vadd.f32 %v368, %v455
  %v458 = vtanh.pop %v457
  %v459 = vsub.f32 1.0, %v447
  %461 = vrot.lane.b32.xlu0 %v458, 96
  %v462 = vpop.permute.xlu0 %461
  %v464 = vmul.f32 %v459, %v462
  %v465 = vmul.f32 %v447, %v362
  %v466 = vadd.f32 %v464, %v465
  %468 = vrot.lane.b32.xlu0 %v466, 96
  %v469 = vpop.permute.xlu0 %468
  %471 = vst.msk [vmem:[#allocation2 + $0x18] sm:$0xff] %vm52, %v469
  %v472 = vld [vmem:[%s0 + $0x20] sm:$0xff]
  %v473 = vsel %vm52, %v469, 0
  %475 = vmatprep.subr.mxu0 0.0
  %476 = vmatpush1.msra.mxu0 %v39
  %477 = vmatprep.subr.mxu0 0.0
  %478 = vmatpush1.msra.mxu0 %v40
  %479 = vmatprep.subr.mxu0 0.0
  %480 = vmatpush1.msra.mxu0 %v41
  %481 = vmatprep.subr.mxu0 0.0
  %482 = vmatpush1.msra.mxu0 %v42
  %483 = vmatprep.subr.mxu0 0.0
  %484 = vmatpush1.msra.mxu0 0.0
  %485 = vmatprep.subr.mxu0 0.0
  %486 = vmatpush1.msra.mxu0 0.0
  %487 = vmatprep.subr.mxu0 0.0
  %488 = vmatpush1.msra.mxu0 0.0
  %489 = vmatprep.subr.mxu0 0.0
  %490 = vmatpush1.msra.mxu0 0.0
  %491 = vmatprep.subr.mxu0 0.0
  %492 = vmatpush1.msra.mxu0 0.0
  %493 = vmatprep.subr.mxu0 0.0
  %494 = vmatpush1.msra.mxu0 0.0
  %495 = vmatprep.subr.mxu0 0.0
  %496 = vmatpush1.msra.mxu0 0.0
  %497 = vmatprep.subr.mxu0 0.0
  %498 = vmatpush1.msra.mxu0 0.0
  %499 = vmatprep.subr.mxu0 0.0
  %500 = vmatpush1.msra.mxu0 0.0
  %501 = vmatprep.subr.mxu0 0.0
  %502 = vmatpush1.msra.mxu0 0.0
  %503 = vmatprep.subr.mxu0 0.0
  %504 = vmatpush1.msra.mxu0 0.0
  %505 = vmatprep.subr.mxu0 0.0
  %506 = vmatpush1.msra.mxu0 0.0
  %507 = vmatprep.subr.mxu0 0.0
  %508 = vmatpush1.msra.mxu0 0.0
  %509 = vmatprep.subr.mxu0 0.0
  %510 = vmatpush1.msra.mxu0 0.0
  %511 = vmatprep.subr.mxu0 0.0
  %512 = vmatpush1.msra.mxu0 0.0
  %513 = vmatprep.subr.mxu0 0.0
  %514 = vmatpush1.msra.mxu0 0.0
  %515 = vmatprep.subr.mxu0 0.0
  %516 = vmatpush1.msra.mxu0 0.0
  %517 = vmatprep.subr.mxu0 0.0
  %518 = vmatpush1.msra.mxu0 0.0
  %519 = vmatprep.subr.mxu0 0.0
  %520 = vmatpush1.msra.mxu0 0.0
  %521 = vmatprep.subr.mxu0 0.0
  %522 = vmatpush1.msra.mxu0 0.0
  %523 = vmatprep.subr.mxu0 0.0
  %524 = vmatpush1.msra.mxu0 0.0
  %525 = vmatprep.subr.mxu0 0.0
  %526 = vmatpush1.msra.mxu0 0.0
  %527 = vmatprep.subr.mxu0 0.0
  %528 = vmatpush1.msra.mxu0 0.0
  %529 = vmatprep.subr.mxu0 0.0
  %530 = vmatpush1.msra.mxu0 0.0
  %531 = vmatprep.subr.mxu0 0.0
  %532 = vmatpush1.msra.mxu0 0.0
  %533 = vmatprep.subr.mxu0 0.0
  %534 = vmatpush1.msra.mxu0 0.0
  %535 = vmatprep.subr.mxu0 0.0
  %536 = vmatpush1.msra.mxu0 0.0
  %537 = vmatprep.subr.mxu0 0.0
  %538 = vmatpush1.msra.mxu0 0.0
  %539 = vmatprep.mubr.f32.mxu0 0.0
  %540 = vmatmul.mubr.f32.gmra.mrb[0].mxu0 %v473
  %v541 = vpop.f32.mrb[0].mxu0
  %v542 = vadd.f32 %v48, %v541
  %v543 = vpop.f32.mrb[0].mxu0
  %544 = vdwg.mxu0
  %v545 = vadd.f32 %v472, %v542
  %v546 = vxor.u32 %v545, 2147483648
  %v547 = vmul.f32 %v546, 1.442695
  %v548 = vpow.pop %v547
  %v549 = vadd.f32 %v548, 1.0
  %v550 = vrcp.pop %v549
  %v551 = vmul.f32 1.0, %v550
  %553 = vrot.lane.b32.xlu0 %v542, 64
  %v554 = vpop.permute.xlu0 %553
  %v556 = vmul.f32 %v551, %v554
  %558 = vrot.lane.b32.xlu0 %v556, 64
  %v559 = vpop.permute.xlu0 %558
  %v561 = vadd.f32 %v472, %v559
  %v562 = vtanh.pop %v561
  %v563 = vsub.f32 1.0, %v551
  %565 = vrot.lane.b32.xlu0 %v562, 96
  %v566 = vpop.permute.xlu0 %565
  %v568 = vmul.f32 %v563, %v566
  %v569 = vmul.f32 %v551, %v466
  %v570 = vadd.f32 %v568, %v569
  %572 = vrot.lane.b32.xlu0 %v570, 96
  %v573 = vpop.permute.xlu0 %572
  %575 = vst.msk [vmem:[#allocation2 + $0x20] sm:$0xff] %vm52, %v573
  %v576 = vld [vmem:[%s0 + $0x28] sm:$0xff]
  %v577 = vsel %vm52, %v573, 0
  %579 = vmatprep.subr.mxu0 0.0
  %580 = vmatpush1.msra.mxu0 %v39
  %581 = vmatprep.subr.mxu0 0.0
  %582 = vmatpush1.msra.mxu0 %v40
  %583 = vmatprep.subr.mxu0 0.0
  %584 = vmatpush1.msra.mxu0 %v41
  %585 = vmatprep.subr.mxu0 0.0
  %586 = vmatpush1.msra.mxu0 %v42
  %587 = vmatprep.subr.mxu0 0.0
  %588 = vmatpush1.msra.mxu0 0.0
  %589 = vmatprep.subr.mxu0 0.0
  %590 = vmatpush1.msra.mxu0 0.0
  %591 = vmatprep.subr.mxu0 0.0
  %592 = vmatpush1.msra.mxu0 0.0
  %593 = vmatprep.subr.mxu0 0.0
  %594 = vmatpush1.msra.mxu0 0.0
  %595 = vmatprep.subr.mxu0 0.0
  %596 = vmatpush1.msra.mxu0 0.0
  %597 = vmatprep.subr.mxu0 0.0
  %598 = vmatpush1.msra.mxu0 0.0
  %599 = vmatprep.subr.mxu0 0.0
  %600 = vmatpush1.msra.mxu0 0.0
  %601 = vmatprep.subr.mxu0 0.0
  %602 = vmatpush1.msra.mxu0 0.0
  %603 = vmatprep.subr.mxu0 0.0
  %604 = vmatpush1.msra.mxu0 0.0
  %605 = vmatprep.subr.mxu0 0.0
  %606 = vmatpush1.msra.mxu0 0.0
  %607 = vmatprep.subr.mxu0 0.0
  %608 = vmatpush1.msra.mxu0 0.0
  %609 = vmatprep.subr.mxu0 0.0
  %610 = vmatpush1.msra.mxu0 0.0
  %611 = vmatprep.subr.mxu0 0.0
  %612 = vmatpush1.msra.mxu0 0.0
  %613 = vmatprep.subr.mxu0 0.0
  %614 = vmatpush1.msra.mxu0 0.0
  %615 = vmatprep.subr.mxu0 0.0
  %616 = vmatpush1.msra.mxu0 0.0
  %617 = vmatprep.subr.mxu0 0.0
  %618 = vmatpush1.msra.mxu0 0.0
  %619 = vmatprep.subr.mxu0 0.0
  %620 = vmatpush1.msra.mxu0 0.0
  %621 = vmatprep.subr.mxu0 0.0
  %622 = vmatpush1.msra.mxu0 0.0
  %623 = vmatprep.subr.mxu0 0.0
  %624 = vmatpush1.msra.mxu0 0.0
  %625 = vmatprep.subr.mxu0 0.0
  %626 = vmatpush1.msra.mxu0 0.0
  %627 = vmatprep.subr.mxu0 0.0
  %628 = vmatpush1.msra.mxu0 0.0
  %629 = vmatprep.subr.mxu0 0.0
  %630 = vmatpush1.msra.mxu0 0.0
  %631 = vmatprep.subr.mxu0 0.0
  %632 = vmatpush1.msra.mxu0 0.0
  %633 = vmatprep.subr.mxu0 0.0
  %634 = vmatpush1.msra.mxu0 0.0
  %635 = vmatprep.subr.mxu0 0.0
  %636 = vmatpush1.msra.mxu0 0.0
  %637 = vmatprep.subr.mxu0 0.0
  %638 = vmatpush1.msra.mxu0 0.0
  %639 = vmatprep.subr.mxu0 0.0
  %640 = vmatpush1.msra.mxu0 0.0
  %641 = vmatprep.subr.mxu0 0.0
  %642 = vmatpush1.msra.mxu0 0.0
  %643 = vmatprep.mubr.f32.mxu0 0.0
  %644 = vmatmul.mubr.f32.gmra.mrb[0].mxu0 %v577
  %v645 = vpop.f32.mrb[0].mxu0
  %v646 = vadd.f32 %v48, %v645
  %v647 = vpop.f32.mrb[0].mxu0
  %648 = vdwg.mxu0
  %v649 = vadd.f32 %v576, %v646
  %v650 = vxor.u32 %v649, 2147483648
  %v651 = vmul.f32 %v650, 1.442695
  %v652 = vpow.pop %v651
  %v653 = vadd.f32 %v652, 1.0
  %v654 = vrcp.pop %v653
  %v655 = vmul.f32 1.0, %v654
  %657 = vrot.lane.b32.xlu0 %v646, 64
  %v658 = vpop.permute.xlu0 %657
  %v660 = vmul.f32 %v655, %v658
  %662 = vrot.lane.b32.xlu0 %v660, 64
  %v663 = vpop.permute.xlu0 %662
  %v665 = vadd.f32 %v576, %v663
  %v666 = vtanh.pop %v665
  %v667 = vsub.f32 1.0, %v655
  %669 = vrot.lane.b32.xlu0 %v666, 96
  %v670 = vpop.permute.xlu0 %669
  %v672 = vmul.f32 %v667, %v670
  %v673 = vmul.f32 %v655, %v570
  %v674 = vadd.f32 %v672, %v673
  %676 = vrot.lane.b32.xlu0 %v674, 96
  %v677 = vpop.permute.xlu0 %676
  %679 = vst.msk [vmem:[#allocation2 + $0x28] sm:$0xff] %vm52, %v677
  %v680 = vld [vmem:[%s0 + $0x30] sm:$0xff]
  %v681 = vsel %vm52, %v677, 0
  %683 = vmatprep.subr.mxu0 0.0
  %684 = vmatpush1.msra.mxu0 %v39
  %685 = vmatprep.subr.mxu0 0.0
  %686 = vmatpush1.msra.mxu0 %v40
  %687 = vmatprep.subr.mxu0 0.0
  %688 = vmatpush1.msra.mxu0 %v41
  %689 = vmatprep.subr.mxu0 0.0
  %690 = vmatpush1.msra.mxu0 %v42
  %691 = vmatprep.subr.mxu0 0.0
  %692 = vmatpush1.msra.mxu0 0.0
  %693 = vmatprep.subr.mxu0 0.0
  %694 = vmatpush1.msra.mxu0 0.0
  %695 = vmatprep.subr.mxu0 0.0
  %696 = vmatpush1.msra.mxu0 0.0
  %697 = vmatprep.subr.mxu0 0.0
  %698 = vmatpush1.msra.mxu0 0.0
  %699 = vmatprep.subr.mxu0 0.0
  %700 = vmatpush1.msra.mxu0 0.0
  %701 = vmatprep.subr.mxu0 0.0
  %702 = vmatpush1.msra.mxu0 0.0
  %703 = vmatprep.subr.mxu0 0.0
  %704 = vmatpush1.msra.mxu0 0.0
  %705 = vmatprep.subr.mxu0 0.0
  %706 = vmatpush1.msra.mxu0 0.0
  %707 = vmatprep.subr.mxu0 0.0
  %708 = vmatpush1.msra.mxu0 0.0
  %709 = vmatprep.subr.mxu0 0.0
  %710 = vmatpush1.msra.mxu0 0.0
  %711 = vmatprep.subr.mxu0 0.0
  %712 = vmatpush1.msra.mxu0 0.0
  %713 = vmatprep.subr.mxu0 0.0
  %714 = vmatpush1.msra.mxu0 0.0
  %715 = vmatprep.subr.mxu0 0.0
  %716 = vmatpush1.msra.mxu0 0.0
  %717 = vmatprep.subr.mxu0 0.0
  %718 = vmatpush1.msra.mxu0 0.0
  %719 = vmatprep.subr.mxu0 0.0
  %720 = vmatpush1.msra.mxu0 0.0
  %721 = vmatprep.subr.mxu0 0.0
  %722 = vmatpush1.msra.mxu0 0.0
  %723 = vmatprep.subr.mxu0 0.0
  %724 = vmatpush1.msra.mxu0 0.0
  %725 = vmatprep.subr.mxu0 0.0
  %726 = vmatpush1.msra.mxu0 0.0
  %727 = vmatprep.subr.mxu0 0.0
  %728 = vmatpush1.msra.mxu0 0.0
  %729 = vmatprep.subr.mxu0 0.0
  %730 = vmatpush1.msra.mxu0 0.0
  %731 = vmatprep.subr.mxu0 0.0
  %732 = vmatpush1.msra.mxu0 0.0
  %733 = vmatprep.subr.mxu0 0.0
  %734 = vmatpush1.msra.mxu0 0.0
  %735 = vmatprep.subr.mxu0 0.0
  %736 = vmatpush1.msra.mxu0 0.0
  %737 = vmatprep.subr.mxu0 0.0
  %738 = vmatpush1.msra.mxu0 0.0
  %739 = vmatprep.subr.mxu0 0.0
  %740 = vmatpush1.msra.mxu0 0.0
  %741 = vmatprep.subr.mxu0 0.0
  %742 = vmatpush1.msra.mxu0 0.0
  %743 = vmatprep.subr.mxu0 0.0
  %744 = vmatpush1.msra.mxu0 0.0
  %745 = vmatprep.subr.mxu0 0.0
  %746 = vmatpush1.msra.mxu0 0.0
  %747 = vmatprep.mubr.f32.mxu0 0.0
  %748 = vmatmul.mubr.f32.gmra.mrb[0].mxu0 %v681
  %v749 = vpop.f32.mrb[0].mxu0
  %v750 = vadd.f32 %v48, %v749
  %v751 = vpop.f32.mrb[0].mxu0
  %752 = vdwg.mxu0
  %v753 = vadd.f32 %v680, %v750
  %v754 = vxor.u32 %v753, 2147483648
  %v755 = vmul.f32 %v754, 1.442695
  %v756 = vpow.pop %v755
  %v757 = vadd.f32 %v756, 1.0
  %v758 = vrcp.pop %v757
  %v759 = vmul.f32 1.0, %v758
  %761 = vrot.lane.b32.xlu0 %v750, 64
  %v762 = vpop.permute.xlu0 %761
  %v764 = vmul.f32 %v759, %v762
  %766 = vrot.lane.b32.xlu0 %v764, 64
  %v767 = vpop.permute.xlu0 %766
  %v769 = vadd.f32 %v680, %v767
  %v770 = vtanh.pop %v769
  %v771 = vsub.f32 1.0, %v759
  %773 = vrot.lane.b32.xlu0 %v770, 96
  %v774 = vpop.permute.xlu0 %773
  %v776 = vmul.f32 %v771, %v774
  %v777 = vmul.f32 %v759, %v674
  %v778 = vadd.f32 %v776, %v777
  %780 = vrot.lane.b32.xlu0 %v778, 96
  %v781 = vpop.permute.xlu0 %780
  %783 = vst.msk [vmem:[#allocation2 + $0x30] sm:$0xff] %vm52, %v781
  %v784 = vld [vmem:[%s0 + $0x38] sm:$0xff]
  %v785 = vsel %vm52, %v781, 0
  %787 = vmatprep.subr.mxu0 0.0
  %788 = vmatpush1.msra.mxu0 %v39
  %789 = vmatprep.subr.mxu0 0.0
  %790 = vmatpush1.msra.mxu0 %v40
  %791 = vmatprep.subr.mxu0 0.0
  %792 = vmatpush1.msra.mxu0 %v41
  %793 = vmatprep.subr.mxu0 0.0
  %794 = vmatpush1.msra.mxu0 %v42
  %795 = vmatprep.subr.mxu0 0.0
  %796 = vmatpush1.msra.mxu0 0.0
  %797 = vmatprep.subr.mxu0 0.0
  %798 = vmatpush1.msra.mxu0 0.0
  %799 = vmatprep.subr.mxu0 0.0
  %800 = vmatpush1.msra.mxu0 0.0
  %801 = vmatprep.subr.mxu0 0.0
  %802 = vmatpush1.msra.mxu0 0.0
  %803 = vmatprep.subr.mxu0 0.0
  %804 = vmatpush1.msra.mxu0 0.0
  %805 = vmatprep.subr.mxu0 0.0
  %806 = vmatpush1.msra.mxu0 0.0
  %807 = vmatprep.subr.mxu0 0.0
  %808 = vmatpush1.msra.mxu0 0.0
  %809 = vmatprep.subr.mxu0 0.0
  %810 = vmatpush1.msra.mxu0 0.0
  %811 = vmatprep.subr.mxu0 0.0
  %812 = vmatpush1.msra.mxu0 0.0
  %813 = vmatprep.subr.mxu0 0.0
  %814 = vmatpush1.msra.mxu0 0.0
  %815 = vmatprep.subr.mxu0 0.0
  %816 = vmatpush1.msra.mxu0 0.0
  %817 = vmatprep.subr.mxu0 0.0
  %818 = vmatpush1.msra.mxu0 0.0
  %819 = vmatprep.subr.mxu0 0.0
  %820 = vmatpush1.msra.mxu0 0.0
  %821 = vmatprep.subr.mxu0 0.0
  %822 = vmatpush1.msra.mxu0 0.0
  %823 = vmatprep.subr.mxu0 0.0
  %824 = vmatpush1.msra.mxu0 0.0
  %825 = vmatprep.subr.mxu0 0.0
  %826 = vmatpush1.msra.mxu0 0.0
  %827 = vmatprep.subr.mxu0 0.0
  %828 = vmatpush1.msra.mxu0 0.0
  %829 = vmatprep.subr.mxu0 0.0
  %830 = vmatpush1.msra.mxu0 0.0
  %831 = vmatprep.subr.mxu0 0.0
  %832 = vmatpush1.msra.mxu0 0.0
  %833 = vmatprep.subr.mxu0 0.0
  %834 = vmatpush1.msra.mxu0 0.0
  %835 = vmatprep.subr.mxu0 0.0
  %836 = vmatpush1.msra.mxu0 0.0
  %837 = vmatprep.subr.mxu0 0.0
  %838 = vmatpush1.msra.mxu0 0.0
  %839 = vmatprep.subr.mxu0 0.0
  %840 = vmatpush1.msra.mxu0 0.0
  %841 = vmatprep.subr.mxu0 0.0
  %842 = vmatpush1.msra.mxu0 0.0
  %843 = vmatprep.subr.mxu0 0.0
  %844 = vmatpush1.msra.mxu0 0.0
  %845 = vmatprep.subr.mxu0 0.0
  %846 = vmatpush1.msra.mxu0 0.0
  %847 = vmatprep.subr.mxu0 0.0
  %848 = vmatpush1.msra.mxu0 0.0
  %849 = vmatprep.subr.mxu0 0.0
  %850 = vmatpush1.msra.mxu0 0.0
  %851 = vmatprep.mubr.f32.mxu0 0.0
  %852 = vmatmul.mubr.f32.gmra.mrb[0].mxu0 %v785
  %v853 = vpop.f32.mrb[0].mxu0
  %v854 = vadd.f32 %v48, %v853
  %v855 = vpop.f32.mrb[0].mxu0
  %856 = vdwg.mxu0
  %v857 = vadd.f32 %v784, %v854
  %v858 = vxor.u32 %v857, 2147483648
  %v859 = vmul.f32 %v858, 1.442695
  %v860 = vpow.pop %v859
  %v861 = vadd.f32 %v860, 1.0
  %v862 = vrcp.pop %v861
  %v863 = vmul.f32 1.0, %v862
  %865 = vrot.lane.b32.xlu0 %v854, 64
  %v866 = vpop.permute.xlu0 %865
  %v868 = vmul.f32 %v863, %v866
  %870 = vrot.lane.b32.xlu0 %v868, 64
  %v871 = vpop.permute.xlu0 %870
  %v873 = vadd.f32 %v784, %v871
  %v874 = vtanh.pop %v873
  %v875 = vsub.f32 1.0, %v863
  %877 = vrot.lane.b32.xlu0 %v874, 96
  %v878 = vpop.permute.xlu0 %877
  %v880 = vmul.f32 %v875, %v878
  %v881 = vmul.f32 %v863, %v778
  %v882 = vadd.f32 %v880, %v881
  %884 = vrot.lane.b32.xlu0 %v882, 96
  %v885 = vpop.permute.xlu0 %884
  %887 = vst.msk [vmem:[#allocation2 + $0x38] sm:$0xff] %vm52, %v885
  %888 = vst.msk [vmem:[%s11] sm:$0xff] %vm52, %v885
  %v889 = vld [vmem:[#allocation2] sm:$0xff]
  %v890 = vld [vmem:[#allocation2 + $0x8] sm:$0xff]
  %v891 = vld [vmem:[#allocation2 + $0x10] sm:$0xff]
  %v892 = vld [vmem:[#allocation2 + $0x18] sm:$0xff]
  %v893 = vld [vmem:[#allocation2 + $0x20] sm:$0xff]
  %v894 = vld [vmem:[#allocation2 + $0x28] sm:$0xff]
  %v895 = vld [vmem:[#allocation2 + $0x30] sm:$0xff]
  %v896 = vld [vmem:[#allocation2 + $0x38] sm:$0xff]
  %v897 = vld [vmem:[%s4] sm:$0xff]
  %v898 = vld [vmem:[%s4 + $0x8] sm:$0xff]
  %v899 = vld [vmem:[%s4 + $0x10] sm:$0xff]
  %v900 = vld [vmem:[%s4 + $0x18] sm:$0xff]
  %v901 = vld [vmem:[%s5] sm:$0x1]
  %v903 = vlaneseq
  %v904 = vshrl.u32 %v903, 7
  %v905 = vsub.s32 0, %v904
  %v906 = vrot.slane %v901, %v905
  %v909 = vsel %vm52, %v889, 0
  %v912 = vsel %vm52, %v890, 0
  %v915 = vsel %vm52, %v891, 0
  %v918 = vsel %vm52, %v892, 0
  %v921 = vsel %vm52, %v893, 0
  %v924 = vsel %vm52, %v894, 0
  %v927 = vsel %vm52, %v895, 0
  %v930 = vsel %vm52, %v896, 0
  %932 = vmatprep.subr.mxu0 0.0
  %933 = vmatpush1.msra.mxu0 %v897
  %934 = vmatprep.subr.mxu0 0.0
  %935 = vmatpush1.msra.mxu0 %v898
  %936 = vmatprep.subr.mxu0 0.0
  %937 = vmatpush1.msra.mxu0 %v899
  %938 = vmatprep.subr.mxu0 0.0
  %939 = vmatpush1.msra.mxu0 %v900
  %940 = vmatprep.subr.mxu0 0.0
  %941 = vmatpush1.msra.mxu0 0.0
  %942 = vmatprep.subr.mxu0 0.0
  %943 = vmatpush1.msra.mxu0 0.0
  %944 = vmatprep.subr.mxu0 0.0
  %945 = vmatpush1.msra.mxu0 0.0
  %946 = vmatprep.subr.mxu0 0.0
  %947 = vmatpush1.msra.mxu0 0.0
  %948 = vmatprep.subr.mxu0 0.0
  %949 = vmatpush1.msra.mxu0 0.0
  %950 = vmatprep.subr.mxu0 0.0
  %951 = vmatpush1.msra.mxu0 0.0
  %952 = vmatprep.subr.mxu0 0.0
  %953 = vmatpush1.msra.mxu0 0.0
  %954 = vmatprep.subr.mxu0 0.0
  %955 = vmatpush1.msra.mxu0 0.0
  %956 = vmatprep.subr.mxu0 0.0
  %957 = vmatpush1.msra.mxu0 0.0
  %958 = vmatprep.subr.mxu0 0.0
  %959 = vmatpush1.msra.mxu0 0.0
  %960 = vmatprep.subr.mxu0 0.0
  %961 = vmatpush1.msra.mxu0 0.0
  %962 = vmatprep.subr.mxu0 0.0
  %963 = vmatpush1.msra.mxu0 0.0
  %964 = vmatprep.subr.mxu0 0.0
  %965 = vmatpush1.msra.mxu0 0.0
  %966 = vmatprep.subr.mxu0 0.0
  %967 = vmatpush1.msra.mxu0 0.0
  %968 = vmatprep.subr.mxu0 0.0
  %969 = vmatpush1.msra.mxu0 0.0
  %970 = vmatprep.subr.mxu0 0.0
  %971 = vmatpush1.msra.mxu0 0.0
  %972 = vmatprep.subr.mxu0 0.0
  %973 = vmatpush1.msra.mxu0 0.0
  %974 = vmatprep.subr.mxu0 0.0
  %975 = vmatpush1.msra.mxu0 0.0
  %976 = vmatprep.subr.mxu0 0.0
  %977 = vmatpush1.msra.mxu0 0.0
  %978 = vmatprep.subr.mxu0 0.0
  %979 = vmatpush1.msra.mxu0 0.0
  %980 = vmatprep.subr.mxu0 0.0
  %981 = vmatpush1.msra.mxu0 0.0
  %982 = vmatprep.subr.mxu0 0.0
  %983 = vmatpush1.msra.mxu0 0.0
  %984 = vmatprep.subr.mxu0 0.0
  %985 = vmatpush1.msra.mxu0 0.0
  %986 = vmatprep.subr.mxu0 0.0
  %987 = vmatpush1.msra.mxu0 0.0
  %988 = vmatprep.subr.mxu0 0.0
  %989 = vmatpush1.msra.mxu0 0.0
  %990 = vmatprep.subr.mxu0 0.0
  %991 = vmatpush1.msra.mxu0 0.0
  %992 = vmatprep.subr.mxu0 0.0
  %993 = vmatpush1.msra.mxu0 0.0
  %994 = vmatprep.subr.mxu0 0.0
  %995 = vmatpush1.msra.mxu0 0.0
  %996 = vmatprep.mubr.f32.mxu0 0.0
  %997 = vmatmul.mubr.f32.gmra.mrb[0].mxu0 %v909
  %v998 = vpop.f32.mrb[0].mxu0
  %v999 = vadd.f32 %v906, %v998
  %v1000 = vpop.f32.mrb[0].mxu0
  %1001 = vmatprep.mubr.f32.mxu0 0.0
  %1002 = vmatmul.mubr.f32.gmra.mrb[0].mxu0 %v912
  %v1003 = vpop.f32.mrb[0].mxu0
  %v1004 = vadd.f32 %v906, %v1003
  %v1005 = vpop.f32.mrb[0].mxu0
  %1006 = vmatprep.mubr.f32.mxu0 0.0
  %1007 = vmatmul.mubr.f32.gmra.mrb[0].mxu0 %v915
  %v1008 = vpop.f32.mrb[0].mxu0
  %v1009 = vadd.f32 %v906, %v1008
  %v1010 = vpop.f32.mrb[0].mxu0
  %1011 = vmatprep.mubr.f32.mxu0 0.0
  %1012 = vmatmul.mubr.f32.gmra.mrb[0].mxu0 %v918
  %v1013 = vpop.f32.mrb[0].mxu0
  %v1014 = vadd.f32 %v906, %v1013
  %v1015 = vpop.f32.mrb[0].mxu0
  %1016 = vmatprep.mubr.f32.mxu0 0.0
  %1017 = vmatmul.mubr.f32.gmra.mrb[0].mxu0 %v921
  %v1018 = vpop.f32.mrb[0].mxu0
  %v1019 = vadd.f32 %v906, %v1018
  %v1020 = vpop.f32.mrb[0].mxu0
  %1021 = vmatprep.mubr.f32.mxu0 0.0
  %1022 = vmatmul.mubr.f32.gmra.mrb[0].mxu0 %v924
  %v1023 = vpop.f32.mrb[0].mxu0
  %v1024 = vadd.f32 %v906, %v1023
  %v1025 = vpop.f32.mrb[0].mxu0
  %1026 = vmatprep.mubr.f32.mxu0 0.0
  %1027 = vmatmul.mubr.f32.gmra.mrb[0].mxu0 %v927
  %v1028 = vpop.f32.mrb[0].mxu0
  %v1029 = vadd.f32 %v906, %v1028
  %v1030 = vpop.f32.mrb[0].mxu0
  %1031 = vmatprep.mubr.f32.mxu0 0.0
  %1032 = vmatmul.mubr.f32.gmra.mrb[0].mxu0 %v930
  %v1033 = vpop.f32.mrb[0].mxu0
  %v1034 = vadd.f32 %v906, %v1033
  %v1035 = vpop.f32.mrb[0].mxu0
  %1036 = vdwg.mxu0
  %vm1037 = vcmask 785408
  %1038 = vst.msk [vmem:[#allocation3] sm:$0xff] %vm1037, %v999
  %1039 = vst.msk [vmem:[#allocation3 + $0x8] sm:$0xff] %vm1037, %v1004
  %1040 = vst.msk [vmem:[#allocation3 + $0x10] sm:$0xff] %vm1037, %v1009
  %1041 = vst.msk [vmem:[#allocation3 + $0x18] sm:$0xff] %vm1037, %v1014
  %1042 = vst.msk [vmem:[#allocation3 + $0x20] sm:$0xff] %vm1037, %v1019
  %1043 = vst.msk [vmem:[#allocation3 + $0x28] sm:$0xff] %vm1037, %v1024
  %1044 = vst.msk [vmem:[#allocation3 + $0x30] sm:$0xff] %vm1037, %v1029
  %1045 = vst.msk [vmem:[#allocation3 + $0x38] sm:$0xff] %vm1037, %v1034
  %v1046 = vld [vmem:[%s6] sm:$0xff]
  %v1047 = vld [vmem:[%s6 + $0x8] sm:$0xff]
  %v1048 = vld [vmem:[%s6 + $0x10] sm:$0xff]
  %v1049 = vld [vmem:[%s6 + $0x18] sm:$0xff]
  %v1050 = vld [vmem:[%s7] sm:$0x1]
  %v1052 = vlaneseq
  %v1053 = vshrl.u32 %v1052, 7
  %v1054 = vsub.s32 0, %v1053
  %v1055 = vrot.slane %v1050, %v1054
  %s1057 = scalar_lea.vmem %s1, 8
  %v1058 = vld [vmem:[%s1057] sm:$0xff]
  %v1059 = vld [vmem:[#allocation3] sm:$0xff]
  %v1061 = vsel %vm52, %v1058, 0
  %1063 = vmatprep.subr.mxu0 0.0
  %1064 = vmatpush1.msra.mxu0 %v1046
  %1065 = vmatprep.subr.mxu0 0.0
  %1066 = vmatpush1.msra.mxu0 %v1047
  %1067 = vmatprep.subr.mxu0 0.0
  %1068 = vmatpush1.msra.mxu0 %v1048
  %1069 = vmatprep.subr.mxu0 0.0
  %1070 = vmatpush1.msra.mxu0 %v1049
  %1071 = vmatprep.subr.mxu0 0.0
  %1072 = vmatpush1.msra.mxu0 0.0
  %1073 = vmatprep.subr.mxu0 0.0
  %1074 = vmatpush1.msra.mxu0 0.0
  %1075 = vmatprep.subr.mxu0 0.0
  %1076 = vmatpush1.msra.mxu0 0.0
  %1077 = vmatprep.subr.mxu0 0.0
  %1078 = vmatpush1.msra.mxu0 0.0
  %1079 = vmatprep.subr.mxu0 0.0
  %1080 = vmatpush1.msra.mxu0 0.0
  %1081 = vmatprep.subr.mxu0 0.0
  %1082 = vmatpush1.msra.mxu0 0.0
  %1083 = vmatprep.subr.mxu0 0.0
  %1084 = vmatpush1.msra.mxu0 0.0
  %1085 = vmatprep.subr.mxu0 0.0
  %1086 = vmatpush1.msra.mxu0 0.0
  %1087 = vmatprep.subr.mxu0 0.0
  %1088 = vmatpush1.msra.mxu0 0.0
  %1089 = vmatprep.subr.mxu0 0.0
  %1090 = vmatpush1.msra.mxu0 0.0
  %1091 = vmatprep.subr.mxu0 0.0
  %1092 = vmatpush1.msra.mxu0 0.0
  %1093 = vmatprep.subr.mxu0 0.0
  %1094 = vmatpush1.msra.mxu0 0.0
  %1095 = vmatprep.subr.mxu0 0.0
  %1096 = vmatpush1.msra.mxu0 0.0
  %1097 = vmatprep.subr.mxu0 0.0
  %1098 = vmatpush1.msra.mxu0 0.0
  %1099 = vmatprep.subr.mxu0 0.0
  %1100 = vmatpush1.msra.mxu0 0.0
  %1101 = vmatprep.subr.mxu0 0.0
  %1102 = vmatpush1.msra.mxu0 0.0
  %1103 = vmatprep.subr.mxu0 0.0
  %1104 = vmatpush1.msra.mxu0 0.0
  %1105 = vmatprep.subr.mxu0 0.0
  %1106 = vmatpush1.msra.mxu0 0.0
  %1107 = vmatprep.subr.mxu0 0.0
  %1108 = vmatpush1.msra.mxu0 0.0
  %1109 = vmatprep.subr.mxu0 0.0
  %1110 = vmatpush1.msra.mxu0 0.0
  %1111 = vmatprep.subr.mxu0 0.0
  %1112 = vmatpush1.msra.mxu0 0.0
  %1113 = vmatprep.subr.mxu0 0.0
  %1114 = vmatpush1.msra.mxu0 0.0
  %1115 = vmatprep.subr.mxu0 0.0
  %1116 = vmatpush1.msra.mxu0 0.0
  %1117 = vmatprep.subr.mxu0 0.0
  %1118 = vmatpush1.msra.mxu0 0.0
  %1119 = vmatprep.subr.mxu0 0.0
  %1120 = vmatpush1.msra.mxu0 0.0
  %1121 = vmatprep.subr.mxu0 0.0
  %1122 = vmatpush1.msra.mxu0 0.0
  %1123 = vmatprep.subr.mxu0 0.0
  %1124 = vmatpush1.msra.mxu0 0.0
  %1125 = vmatprep.subr.mxu0 0.0
  %1126 = vmatpush1.msra.mxu0 0.0
  %1127 = vmatprep.mubr.f32.mxu0 0.0
  %1128 = vmatmul.mubr.f32.gmra.mrb[0].mxu0 %v1061
  %v1129 = vpop.f32.mrb[0].mxu0
  %v1130 = vadd.f32 %v1055, %v1129
  %v1131 = vpop.f32.mrb[0].mxu0
  %1132 = vdwg.mxu0
  %v1133 = vadd.f32 %v1059, %v1130
  %v1134 = vxor.u32 %v1133, 2147483648
  %v1135 = vmul.f32 %v1134, 1.442695
  %v1136 = vpow.pop %v1135
  %v1137 = vadd.f32 %v1136, 1.0
  %v1138 = vrcp.pop %v1137
  %v1139 = vmul.f32 1.0, %v1138
  %1141 = vrot.lane.b32.xlu0 %v1130, 64
  %v1142 = vpop.permute.xlu0 %1141
  %v1144 = vmul.f32 %v1139, %v1142
  %1146 = vrot.lane.b32.xlu0 %v1144, 64
  %v1147 = vpop.permute.xlu0 %1146
  %v1149 = vadd.f32 %v1059, %v1147
  %v1150 = vtanh.pop %v1149
  %v1151 = vsub.f32 1.0, %v1139
  %1153 = vrot.lane.b32.xlu0 %v1150, 96
  %v1154 = vpop.permute.xlu0 %1153
  %v1156 = vmul.f32 %v1151, %v1154
  %1157 = vrot.lane.b32.xlu0 %v1058, 32
  %v1158 = vpop.permute.xlu0 %1157
  %v1160 = vmul.f32 %v1139, %v1158
  %v1161 = vadd.f32 %v1156, %v1160
  %1163 = vrot.lane.b32.xlu0 %v1161, 96
  %v1164 = vpop.permute.xlu0 %1163
  %1166 = vst.msk [vmem:[#allocation2] sm:$0xff] %vm52, %v1164
  %v1167 = vld [vmem:[#allocation3 + $0x8] sm:$0xff]
  %v1168 = vsel %vm52, %v1164, 0
  %1170 = vmatprep.subr.mxu0 0.0
  %1171 = vmatpush1.msra.mxu0 %v1046
  %1172 = vmatprep.subr.mxu0 0.0
  %1173 = vmatpush1.msra.mxu0 %v1047
  %1174 = vmatprep.subr.mxu0 0.0
  %1175 = vmatpush1.msra.mxu0 %v1048
  %1176 = vmatprep.subr.mxu0 0.0
  %1177 = vmatpush1.msra.mxu0 %v1049
  %1178 = vmatprep.subr.mxu0 0.0
  %1179 = vmatpush1.msra.mxu0 0.0
  %1180 = vmatprep.subr.mxu0 0.0
  %1181 = vmatpush1.msra.mxu0 0.0
  %1182 = vmatprep.subr.mxu0 0.0
  %1183 = vmatpush1.msra.mxu0 0.0
  %1184 = vmatprep.subr.mxu0 0.0
  %1185 = vmatpush1.msra.mxu0 0.0
  %1186 = vmatprep.subr.mxu0 0.0
  %1187 = vmatpush1.msra.mxu0 0.0
  %1188 = vmatprep.subr.mxu0 0.0
  %1189 = vmatpush1.msra.mxu0 0.0
  %1190 = vmatprep.subr.mxu0 0.0
  %1191 = vmatpush1.msra.mxu0 0.0
  %1192 = vmatprep.subr.mxu0 0.0
  %1193 = vmatpush1.msra.mxu0 0.0
  %1194 = vmatprep.subr.mxu0 0.0
  %1195 = vmatpush1.msra.mxu0 0.0
  %1196 = vmatprep.subr.mxu0 0.0
  %1197 = vmatpush1.msra.mxu0 0.0
  %1198 = vmatprep.subr.mxu0 0.0
  %1199 = vmatpush1.msra.mxu0 0.0
  %1200 = vmatprep.subr.mxu0 0.0
  %1201 = vmatpush1.msra.mxu0 0.0
  %1202 = vmatprep.subr.mxu0 0.0
  %1203 = vmatpush1.msra.mxu0 0.0
  %1204 = vmatprep.subr.mxu0 0.0
  %1205 = vmatpush1.msra.mxu0 0.0
  %1206 = vmatprep.subr.mxu0 0.0
  %1207 = vmatpush1.msra.mxu0 0.0
  %1208 = vmatprep.subr.mxu0 0.0
  %1209 = vmatpush1.msra.mxu0 0.0
  %1210 = vmatprep.subr.mxu0 0.0
  %1211 = vmatpush1.msra.mxu0 0.0
  %1212 = vmatprep.subr.mxu0 0.0
  %1213 = vmatpush1.msra.mxu0 0.0
  %1214 = vmatprep.subr.mxu0 0.0
  %1215 = vmatpush1.msra.mxu0 0.0
  %1216 = vmatprep.subr.mxu0 0.0
  %1217 = vmatpush1.msra.mxu0 0.0
  %1218 = vmatprep.subr.mxu0 0.0
  %1219 = vmatpush1.msra.mxu0 0.0
  %1220 = vmatprep.subr.mxu0 0.0
  %1221 = vmatpush1.msra.mxu0 0.0
  %1222 = vmatprep.subr.mxu0 0.0
  %1223 = vmatpush1.msra.mxu0 0.0
  %1224 = vmatprep.subr.mxu0 0.0
  %1225 = vmatpush1.msra.mxu0 0.0
  %1226 = vmatprep.subr.mxu0 0.0
  %1227 = vmatpush1.msra.mxu0 0.0
  %1228 = vmatprep.subr.mxu0 0.0
  %1229 = vmatpush1.msra.mxu0 0.0
  %1230 = vmatprep.subr.mxu0 0.0
  %1231 = vmatpush1.msra.mxu0 0.0
  %1232 = vmatprep.subr.mxu0 0.0
  %1233 = vmatpush1.msra.mxu0 0.0
  %1234 = vmatprep.mubr.f32.mxu0 0.0
  %1235 = vmatmul.mubr.f32.gmra.mrb[0].mxu0 %v1168
  %v1236 = vpop.f32.mrb[0].mxu0
  %v1237 = vadd.f32 %v1055, %v1236
  %v1238 = vpop.f32.mrb[0].mxu0
  %1239 = vdwg.mxu0
  %v1240 = vadd.f32 %v1167, %v1237
  %v1241 = vxor.u32 %v1240, 2147483648
  %v1242 = vmul.f32 %v1241, 1.442695
  %v1243 = vpow.pop %v1242
  %v1244 = vadd.f32 %v1243, 1.0
  %v1245 = vrcp.pop %v1244
  %v1246 = vmul.f32 1.0, %v1245
  %1248 = vrot.lane.b32.xlu0 %v1237, 64
  %v1249 = vpop.permute.xlu0 %1248
  %v1251 = vmul.f32 %v1246, %v1249
  %1253 = vrot.lane.b32.xlu0 %v1251, 64
  %v1254 = vpop.permute.xlu0 %1253
  %v1256 = vadd.f32 %v1167, %v1254
  %v1257 = vtanh.pop %v1256
  %v1258 = vsub.f32 1.0, %v1246
  %1260 = vrot.lane.b32.xlu0 %v1257, 96
  %v1261 = vpop.permute.xlu0 %1260
  %v1263 = vmul.f32 %v1258, %v1261
  %v1264 = vmul.f32 %v1246, %v1161
  %v1265 = vadd.f32 %v1263, %v1264
  %1267 = vrot.lane.b32.xlu0 %v1265, 96
  %v1268 = vpop.permute.xlu0 %1267
  %1270 = vst.msk [vmem:[#allocation2 + $0x8] sm:$0xff] %vm52, %v1268
  %v1271 = vld [vmem:[#allocation3 + $0x10] sm:$0xff]
  %v1272 = vsel %vm52, %v1268, 0
  %1274 = vmatprep.subr.mxu0 0.0
  %1275 = vmatpush1.msra.mxu0 %v1046
  %1276 = vmatprep.subr.mxu0 0.0
  %1277 = vmatpush1.msra.mxu0 %v1047
  %1278 = vmatprep.subr.mxu0 0.0
  %1279 = vmatpush1.msra.mxu0 %v1048
  %1280 = vmatprep.subr.mxu0 0.0
  %1281 = vmatpush1.msra.mxu0 %v1049
  %1282 = vmatprep.subr.mxu0 0.0
  %1283 = vmatpush1.msra.mxu0 0.0
  %1284 = vmatprep.subr.mxu0 0.0
  %1285 = vmatpush1.msra.mxu0 0.0
  %1286 = vmatprep.subr.mxu0 0.0
  %1287 = vmatpush1.msra.mxu0 0.0
  %1288 = vmatprep.subr.mxu0 0.0
  %1289 = vmatpush1.msra.mxu0 0.0
  %1290 = vmatprep.subr.mxu0 0.0
  %1291 = vmatpush1.msra.mxu0 0.0
  %1292 = vmatprep.subr.mxu0 0.0
  %1293 = vmatpush1.msra.mxu0 0.0
  %1294 = vmatprep.subr.mxu0 0.0
  %1295 = vmatpush1.msra.mxu0 0.0
  %1296 = vmatprep.subr.mxu0 0.0
  %1297 = vmatpush1.msra.mxu0 0.0
  %1298 = vmatprep.subr.mxu0 0.0
  %1299 = vmatpush1.msra.mxu0 0.0
  %1300 = vmatprep.subr.mxu0 0.0
  %1301 = vmatpush1.msra.mxu0 0.0
  %1302 = vmatprep.subr.mxu0 0.0
  %1303 = vmatpush1.msra.mxu0 0.0
  %1304 = vmatprep.subr.mxu0 0.0
  %1305 = vmatpush1.msra.mxu0 0.0
  %1306 = vmatprep.subr.mxu0 0.0
  %1307 = vmatpush1.msra.mxu0 0.0
  %1308 = vmatprep.subr.mxu0 0.0
  %1309 = vmatpush1.msra.mxu0 0.0
  %1310 = vmatprep.subr.mxu0 0.0
  %1311 = vmatpush1.msra.mxu0 0.0
  %1312 = vmatprep.subr.mxu0 0.0
  %1313 = vmatpush1.msra.mxu0 0.0
  %1314 = vmatprep.subr.mxu0 0.0
  %1315 = vmatpush1.msra.mxu0 0.0
  %1316 = vmatprep.subr.mxu0 0.0
  %1317 = vmatpush1.msra.mxu0 0.0
  %1318 = vmatprep.subr.mxu0 0.0
  %1319 = vmatpush1.msra.mxu0 0.0
  %1320 = vmatprep.subr.mxu0 0.0
  %1321 = vmatpush1.msra.mxu0 0.0
  %1322 = vmatprep.subr.mxu0 0.0
  %1323 = vmatpush1.msra.mxu0 0.0
  %1324 = vmatprep.subr.mxu0 0.0
  %1325 = vmatpush1.msra.mxu0 0.0
  %1326 = vmatprep.subr.mxu0 0.0
  %1327 = vmatpush1.msra.mxu0 0.0
  %1328 = vmatprep.subr.mxu0 0.0
  %1329 = vmatpush1.msra.mxu0 0.0
  %1330 = vmatprep.subr.mxu0 0.0
  %1331 = vmatpush1.msra.mxu0 0.0
  %1332 = vmatprep.subr.mxu0 0.0
  %1333 = vmatpush1.msra.mxu0 0.0
  %1334 = vmatprep.subr.mxu0 0.0
  %1335 = vmatpush1.msra.mxu0 0.0
  %1336 = vmatprep.subr.mxu0 0.0
  %1337 = vmatpush1.msra.mxu0 0.0
  %1338 = vmatprep.mubr.f32.mxu0 0.0
  %1339 = vmatmul.mubr.f32.gmra.mrb[0].mxu0 %v1272
  %v1340 = vpop.f32.mrb[0].mxu0
  %v1341 = vadd.f32 %v1055, %v1340
  %v1342 = vpop.f32.mrb[0].mxu0
  %1343 = vdwg.mxu0
  %v1344 = vadd.f32 %v1271, %v1341
  %v1345 = vxor.u32 %v1344, 2147483648
  %v1346 = vmul.f32 %v1345, 1.442695
  %v1347 = vpow.pop %v1346
  %v1348 = vadd.f32 %v1347, 1.0
  %v1349 = vrcp.pop %v1348
  %v1350 = vmul.f32 1.0, %v1349
  %1352 = vrot.lane.b32.xlu0 %v1341, 64
  %v1353 = vpop.permute.xlu0 %1352
  %v1355 = vmul.f32 %v1350, %v1353
  %1357 = vrot.lane.b32.xlu0 %v1355, 64
  %v1358 = vpop.permute.xlu0 %1357
  %v1360 = vadd.f32 %v1271, %v1358
  %v1361 = vtanh.pop %v1360
  %v1362 = vsub.f32 1.0, %v1350
  %1364 = vrot.lane.b32.xlu0 %v1361, 96
  %v1365 = vpop.permute.xlu0 %1364
  %v1367 = vmul.f32 %v1362, %v1365
  %v1368 = vmul.f32 %v1350, %v1265
  %v1369 = vadd.f32 %v1367, %v1368
  %1371 = vrot.lane.b32.xlu0 %v1369, 96
  %v1372 = vpop.permute.xlu0 %1371
  %1374 = vst.msk [vmem:[#allocation2 + $0x10] sm:$0xff] %vm52, %v1372
  %v1375 = vld [vmem:[#allocation3 + $0x18] sm:$0xff]
  %v1376 = vsel %vm52, %v1372, 0
  %1378 = vmatprep.subr.mxu0 0.0
  %1379 = vmatpush1.msra.mxu0 %v1046
  %1380 = vmatprep.subr.mxu0 0.0
  %1381 = vmatpush1.msra.mxu0 %v1047
  %1382 = vmatprep.subr.mxu0 0.0
  %1383 = vmatpush1.msra.mxu0 %v1048
  %1384 = vmatprep.subr.mxu0 0.0
  %1385 = vmatpush1.msra.mxu0 %v1049
  %1386 = vmatprep.subr.mxu0 0.0
  %1387 = vmatpush1.msra.mxu0 0.0
  %1388 = vmatprep.subr.mxu0 0.0
  %1389 = vmatpush1.msra.mxu0 0.0
  %1390 = vmatprep.subr.mxu0 0.0
  %1391 = vmatpush1.msra.mxu0 0.0
  %1392 = vmatprep.subr.mxu0 0.0
  %1393 = vmatpush1.msra.mxu0 0.0
  %1394 = vmatprep.subr.mxu0 0.0
  %1395 = vmatpush1.msra.mxu0 0.0
  %1396 = vmatprep.subr.mxu0 0.0
  %1397 = vmatpush1.msra.mxu0 0.0
  %1398 = vmatprep.subr.mxu0 0.0
  %1399 = vmatpush1.msra.mxu0 0.0
  %1400 = vmatprep.subr.mxu0 0.0
  %1401 = vmatpush1.msra.mxu0 0.0
  %1402 = vmatprep.subr.mxu0 0.0
  %1403 = vmatpush1.msra.mxu0 0.0
  %1404 = vmatprep.subr.mxu0 0.0
  %1405 = vmatpush1.msra.mxu0 0.0
  %1406 = vmatprep.subr.mxu0 0.0
  %1407 = vmatpush1.msra.mxu0 0.0
  %1408 = vmatprep.subr.mxu0 0.0
  %1409 = vmatpush1.msra.mxu0 0.0
  %1410 = vmatprep.subr.mxu0 0.0
  %1411 = vmatpush1.msra.mxu0 0.0
  %1412 = vmatprep.subr.mxu0 0.0
  %1413 = vmatpush1.msra.mxu0 0.0
  %1414 = vmatprep.subr.mxu0 0.0
  %1415 = vmatpush1.msra.mxu0 0.0
  %1416 = vmatprep.subr.mxu0 0.0
  %1417 = vmatpush1.msra.mxu0 0.0
  %1418 = vmatprep.subr.mxu0 0.0
  %1419 = vmatpush1.msra.mxu0 0.0
  %1420 = vmatprep.subr.mxu0 0.0
  %1421 = vmatpush1.msra.mxu0 0.0
  %1422 = vmatprep.subr.mxu0 0.0
  %1423 = vmatpush1.msra.mxu0 0.0
  %1424 = vmatprep.subr.mxu0 0.0
  %1425 = vmatpush1.msra.mxu0 0.0
  %1426 = vmatprep.subr.mxu0 0.0
  %1427 = vmatpush1.msra.mxu0 0.0
  %1428 = vmatprep.subr.mxu0 0.0
  %1429 = vmatpush1.msra.mxu0 0.0
  %1430 = vmatprep.subr.mxu0 0.0
  %1431 = vmatpush1.msra.mxu0 0.0
  %1432 = vmatprep.subr.mxu0 0.0
  %1433 = vmatpush1.msra.mxu0 0.0
  %1434 = vmatprep.subr.mxu0 0.0
  %1435 = vmatpush1.msra.mxu0 0.0
  %1436 = vmatprep.subr.mxu0 0.0
  %1437 = vmatpush1.msra.mxu0 0.0
  %1438 = vmatprep.subr.mxu0 0.0
  %1439 = vmatpush1.msra.mxu0 0.0
  %1440 = vmatprep.subr.mxu0 0.0
  %1441 = vmatpush1.msra.mxu0 0.0
  %1442 = vmatprep.mubr.f32.mxu0 0.0
  %1443 = vmatmul.mubr.f32.gmra.mrb[0].mxu0 %v1376
  %v1444 = vpop.f32.mrb[0].mxu0
  %v1445 = vadd.f32 %v1055, %v1444
  %v1446 = vpop.f32.mrb[0].mxu0
  %1447 = vdwg.mxu0
  %v1448 = vadd.f32 %v1375, %v1445
  %v1449 = vxor.u32 %v1448, 2147483648
  %v1450 = vmul.f32 %v1449, 1.442695
  %v1451 = vpow.pop %v1450
  %v1452 = vadd.f32 %v1451, 1.0
  %v1453 = vrcp.pop %v1452
  %v1454 = vmul.f32 1.0, %v1453
  %1456 = vrot.lane.b32.xlu0 %v1445, 64
  %v1457 = vpop.permute.xlu0 %1456
  %v1459 = vmul.f32 %v1454, %v1457
  %1461 = vrot.lane.b32.xlu0 %v1459, 64
  %v1462 = vpop.permute.xlu0 %1461
  %v1464 = vadd.f32 %v1375, %v1462
  %v1465 = vtanh.pop %v1464
  %v1466 = vsub.f32 1.0, %v1454
  %1468 = vrot.lane.b32.xlu0 %v1465, 96
  %v1469 = vpop.permute.xlu0 %1468
  %v1471 = vmul.f32 %v1466, %v1469
  %v1472 = vmul.f32 %v1454, %v1369
  %v1473 = vadd.f32 %v1471, %v1472
  %1475 = vrot.lane.b32.xlu0 %v1473, 96
  %v1476 = vpop.permute.xlu0 %1475
  %1478 = vst.msk [vmem:[#allocation2 + $0x18] sm:$0xff] %vm52, %v1476
  %v1479 = vld [vmem:[#allocation3 + $0x20] sm:$0xff]
  %v1480 = vsel %vm52, %v1476, 0
  %1482 = vmatprep.subr.mxu0 0.0
  %1483 = vmatpush1.msra.mxu0 %v1046
  %1484 = vmatprep.subr.mxu0 0.0
  %1485 = vmatpush1.msra.mxu0 %v1047
  %1486 = vmatprep.subr.mxu0 0.0
  %1487 = vmatpush1.msra.mxu0 %v1048
  %1488 = vmatprep.subr.mxu0 0.0
  %1489 = vmatpush1.msra.mxu0 %v1049
  %1490 = vmatprep.subr.mxu0 0.0
  %1491 = vmatpush1.msra.mxu0 0.0
  %1492 = vmatprep.subr.mxu0 0.0
  %1493 = vmatpush1.msra.mxu0 0.0
  %1494 = vmatprep.subr.mxu0 0.0
  %1495 = vmatpush1.msra.mxu0 0.0
  %1496 = vmatprep.subr.mxu0 0.0
  %1497 = vmatpush1.msra.mxu0 0.0
  %1498 = vmatprep.subr.mxu0 0.0
  %1499 = vmatpush1.msra.mxu0 0.0
  %1500 = vmatprep.subr.mxu0 0.0
  %1501 = vmatpush1.msra.mxu0 0.0
  %1502 = vmatprep.subr.mxu0 0.0
  %1503 = vmatpush1.msra.mxu0 0.0
  %1504 = vmatprep.subr.mxu0 0.0
  %1505 = vmatpush1.msra.mxu0 0.0
  %1506 = vmatprep.subr.mxu0 0.0
  %1507 = vmatpush1.msra.mxu0 0.0
  %1508 = vmatprep.subr.mxu0 0.0
  %1509 = vmatpush1.msra.mxu0 0.0
  %1510 = vmatprep.subr.mxu0 0.0
  %1511 = vmatpush1.msra.mxu0 0.0
  %1512 = vmatprep.subr.mxu0 0.0
  %1513 = vmatpush1.msra.mxu0 0.0
  %1514 = vmatprep.subr.mxu0 0.0
  %1515 = vmatpush1.msra.mxu0 0.0
  %1516 = vmatprep.subr.mxu0 0.0
  %1517 = vmatpush1.msra.mxu0 0.0
  %1518 = vmatprep.subr.mxu0 0.0
  %1519 = vmatpush1.msra.mxu0 0.0
  %1520 = vmatprep.subr.mxu0 0.0
  %1521 = vmatpush1.msra.mxu0 0.0
  %1522 = vmatprep.subr.mxu0 0.0
  %1523 = vmatpush1.msra.mxu0 0.0
  %1524 = vmatprep.subr.mxu0 0.0
  %1525 = vmatpush1.msra.mxu0 0.0
  %1526 = vmatprep.subr.mxu0 0.0
  %1527 = vmatpush1.msra.mxu0 0.0
  %1528 = vmatprep.subr.mxu0 0.0
  %1529 = vmatpush1.msra.mxu0 0.0
  %1530 = vmatprep.subr.mxu0 0.0
  %1531 = vmatpush1.msra.mxu0 0.0
  %1532 = vmatprep.subr.mxu0 0.0
  %1533 = vmatpush1.msra.mxu0 0.0
  %1534 = vmatprep.subr.mxu0 0.0
  %1535 = vmatpush1.msra.mxu0 0.0
  %1536 = vmatprep.subr.mxu0 0.0
  %1537 = vmatpush1.msra.mxu0 0.0
  %1538 = vmatprep.subr.mxu0 0.0
  %1539 = vmatpush1.msra.mxu0 0.0
  %1540 = vmatprep.subr.mxu0 0.0
  %1541 = vmatpush1.msra.mxu0 0.0
  %1542 = vmatprep.subr.mxu0 0.0
  %1543 = vmatpush1.msra.mxu0 0.0
  %1544 = vmatprep.subr.mxu0 0.0
  %1545 = vmatpush1.msra.mxu0 0.0
  %1546 = vmatprep.mubr.f32.mxu0 0.0
  %1547 = vmatmul.mubr.f32.gmra.mrb[0].mxu0 %v1480
  %v1548 = vpop.f32.mrb[0].mxu0
  %v1549 = vadd.f32 %v1055, %v1548
  %v1550 = vpop.f32.mrb[0].mxu0
  %1551 = vdwg.mxu0
  %v1552 = vadd.f32 %v1479, %v1549
  %v1553 = vxor.u32 %v1552, 2147483648
  %v1554 = vmul.f32 %v1553, 1.442695
  %v1555 = vpow.pop %v1554
  %v1556 = vadd.f32 %v1555, 1.0
  %v1557 = vrcp.pop %v1556
  %v1558 = vmul.f32 1.0, %v1557
  %1560 = vrot.lane.b32.xlu0 %v1549, 64
  %v1561 = vpop.permute.xlu0 %1560
  %v1563 = vmul.f32 %v1558, %v1561
  %1565 = vrot.lane.b32.xlu0 %v1563, 64
  %v1566 = vpop.permute.xlu0 %1565
  %v1568 = vadd.f32 %v1479, %v1566
  %v1569 = vtanh.pop %v1568
  %v1570 = vsub.f32 1.0, %v1558
  %1572 = vrot.lane.b32.xlu0 %v1569, 96
  %v1573 = vpop.permute.xlu0 %1572
  %v1575 = vmul.f32 %v1570, %v1573
  %v1576 = vmul.f32 %v1558, %v1473
  %v1577 = vadd.f32 %v1575, %v1576
  %1579 = vrot.lane.b32.xlu0 %v1577, 96
  %v1580 = vpop.permute.xlu0 %1579
  %1582 = vst.msk [vmem:[#allocation2 + $0x20] sm:$0xff] %vm52, %v1580
  %v1583 = vld [vmem:[#allocation3 + $0x28] sm:$0xff]
  %v1584 = vsel %vm52, %v1580, 0
  %1586 = vmatprep.subr.mxu0 0.0
  %1587 = vmatpush1.msra.mxu0 %v1046
  %1588 = vmatprep.subr.mxu0 0.0
  %1589 = vmatpush1.msra.mxu0 %v1047
  %1590 = vmatprep.subr.mxu0 0.0
  %1591 = vmatpush1.msra.mxu0 %v1048
  %1592 = vmatprep.subr.mxu0 0.0
  %1593 = vmatpush1.msra.mxu0 %v1049
  %1594 = vmatprep.subr.mxu0 0.0
  %1595 = vmatpush1.msra.mxu0 0.0
  %1596 = vmatprep.subr.mxu0 0.0
  %1597 = vmatpush1.msra.mxu0 0.0
  %1598 = vmatprep.subr.mxu0 0.0
  %1599 = vmatpush1.msra.mxu0 0.0
  %1600 = vmatprep.subr.mxu0 0.0
  %1601 = vmatpush1.msra.mxu0 0.0
  %1602 = vmatprep.subr.mxu0 0.0
  %1603 = vmatpush1.msra.mxu0 0.0
  %1604 = vmatprep.subr.mxu0 0.0
  %1605 = vmatpush1.msra.mxu0 0.0
  %1606 = vmatprep.subr.mxu0 0.0
  %1607 = vmatpush1.msra.mxu0 0.0
  %1608 = vmatprep.subr.mxu0 0.0
  %1609 = vmatpush1.msra.mxu0 0.0
  %1610 = vmatprep.subr.mxu0 0.0
  %1611 = vmatpush1.msra.mxu0 0.0
  %1612 = vmatprep.subr.mxu0 0.0
  %1613 = vmatpush1.msra.mxu0 0.0
  %1614 = vmatprep.subr.mxu0 0.0
  %1615 = vmatpush1.msra.mxu0 0.0
  %1616 = vmatprep.subr.mxu0 0.0
  %1617 = vmatpush1.msra.mxu0 0.0
  %1618 = vmatprep.subr.mxu0 0.0
  %1619 = vmatpush1.msra.mxu0 0.0
  %1620 = vmatprep.subr.mxu0 0.0
  %1621 = vmatpush1.msra.mxu0 0.0
  %1622 = vmatprep.subr.mxu0 0.0
  %1623 = vmatpush1.msra.mxu0 0.0
  %1624 = vmatprep.subr.mxu0 0.0
  %1625 = vmatpush1.msra.mxu0 0.0
  %1626 = vmatprep.subr.mxu0 0.0
  %1627 = vmatpush1.msra.mxu0 0.0
  %1628 = vmatprep.subr.mxu0 0.0
  %1629 = vmatpush1.msra.mxu0 0.0
  %1630 = vmatprep.subr.mxu0 0.0
  %1631 = vmatpush1.msra.mxu0 0.0
  %1632 = vmatprep.subr.mxu0 0.0
  %1633 = vmatpush1.msra.mxu0 0.0
  %1634 = vmatprep.subr.mxu0 0.0
  %1635 = vmatpush1.msra.mxu0 0.0
  %1636 = vmatprep.subr.mxu0 0.0
  %1637 = vmatpush1.msra.mxu0 0.0
  %1638 = vmatprep.subr.mxu0 0.0
  %1639 = vmatpush1.msra.mxu0 0.0
  %1640 = vmatprep.subr.mxu0 0.0
  %1641 = vmatpush1.msra.mxu0 0.0
  %1642 = vmatprep.subr.mxu0 0.0
  %1643 = vmatpush1.msra.mxu0 0.0
  %1644 = vmatprep.subr.mxu0 0.0
  %1645 = vmatpush1.msra.mxu0 0.0
  %1646 = vmatprep.subr.mxu0 0.0
  %1647 = vmatpush1.msra.mxu0 0.0
  %1648 = vmatprep.subr.mxu0 0.0
  %1649 = vmatpush1.msra.mxu0 0.0
  %1650 = vmatprep.mubr.f32.mxu0 0.0
  %1651 = vmatmul.mubr.f32.gmra.mrb[0].mxu0 %v1584
  %v1652 = vpop.f32.mrb[0].mxu0
  %v1653 = vadd.f32 %v1055, %v1652
  %v1654 = vpop.f32.mrb[0].mxu0
  %1655 = vdwg.mxu0
  %v1656 = vadd.f32 %v1583, %v1653
  %v1657 = vxor.u32 %v1656, 2147483648
  %v1658 = vmul.f32 %v1657, 1.442695
  %v1659 = vpow.pop %v1658
  %v1660 = vadd.f32 %v1659, 1.0
  %v1661 = vrcp.pop %v1660
  %v1662 = vmul.f32 1.0, %v1661
  %1664 = vrot.lane.b32.xlu0 %v1653, 64
  %v1665 = vpop.permute.xlu0 %1664
  %v1667 = vmul.f32 %v1662, %v1665
  %1669 = vrot.lane.b32.xlu0 %v1667, 64
  %v1670 = vpop.permute.xlu0 %1669
  %v1672 = vadd.f32 %v1583, %v1670
  %v1673 = vtanh.pop %v1672
  %v1674 = vsub.f32 1.0, %v1662
  %1676 = vrot.lane.b32.xlu0 %v1673, 96
  %v1677 = vpop.permute.xlu0 %1676
  %v1679 = vmul.f32 %v1674, %v1677
  %v1680 = vmul.f32 %v1662, %v1577
  %v1681 = vadd.f32 %v1679, %v1680
  %1683 = vrot.lane.b32.xlu0 %v1681, 96
  %v1684 = vpop.permute.xlu0 %1683
  %1686 = vst.msk [vmem:[#allocation2 + $0x28] sm:$0xff] %vm52, %v1684
  %v1687 = vld [vmem:[#allocation3 + $0x30] sm:$0xff]
  %v1688 = vsel %vm52, %v1684, 0
  %1690 = vmatprep.subr.mxu0 0.0
  %1691 = vmatpush1.msra.mxu0 %v1046
  %1692 = vmatprep.subr.mxu0 0.0
  %1693 = vmatpush1.msra.mxu0 %v1047
  %1694 = vmatprep.subr.mxu0 0.0
  %1695 = vmatpush1.msra.mxu0 %v1048
  %1696 = vmatprep.subr.mxu0 0.0
  %1697 = vmatpush1.msra.mxu0 %v1049
  %1698 = vmatprep.subr.mxu0 0.0
  %1699 = vmatpush1.msra.mxu0 0.0
  %1700 = vmatprep.subr.mxu0 0.0
  %1701 = vmatpush1.msra.mxu0 0.0
  %1702 = vmatprep.subr.mxu0 0.0
  %1703 = vmatpush1.msra.mxu0 0.0
  %1704 = vmatprep.subr.mxu0 0.0
  %1705 = vmatpush1.msra.mxu0 0.0
  %1706 = vmatprep.subr.mxu0 0.0
  %1707 = vmatpush1.msra.mxu0 0.0
  %1708 = vmatprep.subr.mxu0 0.0
  %1709 = vmatpush1.msra.mxu0 0.0
  %1710 = vmatprep.subr.mxu0 0.0
  %1711 = vmatpush1.msra.mxu0 0.0
  %1712 = vmatprep.subr.mxu0 0.0
  %1713 = vmatpush1.msra.mxu0 0.0
  %1714 = vmatprep.subr.mxu0 0.0
  %1715 = vmatpush1.msra.mxu0 0.0
  %1716 = vmatprep.subr.mxu0 0.0
  %1717 = vmatpush1.msra.mxu0 0.0
  %1718 = vmatprep.subr.mxu0 0.0
  %1719 = vmatpush1.msra.mxu0 0.0
  %1720 = vmatprep.subr.mxu0 0.0
  %1721 = vmatpush1.msra.mxu0 0.0
  %1722 = vmatprep.subr.mxu0 0.0
  %1723 = vmatpush1.msra.mxu0 0.0
  %1724 = vmatprep.subr.mxu0 0.0
  %1725 = vmatpush1.msra.mxu0 0.0
  %1726 = vmatprep.subr.mxu0 0.0
  %1727 = vmatpush1.msra.mxu0 0.0
  %1728 = vmatprep.subr.mxu0 0.0
  %1729 = vmatpush1.msra.mxu0 0.0
  %1730 = vmatprep.subr.mxu0 0.0
  %1731 = vmatpush1.msra.mxu0 0.0
  %1732 = vmatprep.subr.mxu0 0.0
  %1733 = vmatpush1.msra.mxu0 0.0
  %1734 = vmatprep.subr.mxu0 0.0
  %1735 = vmatpush1.msra.mxu0 0.0
  %1736 = vmatprep.subr.mxu0 0.0
  %1737 = vmatpush1.msra.mxu0 0.0
  %1738 = vmatprep.subr.mxu0 0.0
  %1739 = vmatpush1.msra.mxu0 0.0
  %1740 = vmatprep.subr.mxu0 0.0
  %1741 = vmatpush1.msra.mxu0 0.0
  %1742 = vmatprep.subr.mxu0 0.0
  %1743 = vmatpush1.msra.mxu0 0.0
  %1744 = vmatprep.subr.mxu0 0.0
  %1745 = vmatpush1.msra.mxu0 0.0
  %1746 = vmatprep.subr.mxu0 0.0
  %1747 = vmatpush1.msra.mxu0 0.0
  %1748 = vmatprep.subr.mxu0 0.0
  %1749 = vmatpush1.msra.mxu0 0.0
  %1750 = vmatprep.subr.mxu0 0.0
  %1751 = vmatpush1.msra.mxu0 0.0
  %1752 = vmatprep.subr.mxu0 0.0
  %1753 = vmatpush1.msra.mxu0 0.0
  %1754 = vmatprep.mubr.f32.mxu0 0.0
  %1755 = vmatmul.mubr.f32.gmra.mrb[0].mxu0 %v1688
  %v1756 = vpop.f32.mrb[0].mxu0
  %v1757 = vadd.f32 %v1055, %v1756
  %v1758 = vpop.f32.mrb[0].mxu0
  %1759 = vdwg.mxu0
  %v1760 = vadd.f32 %v1687, %v1757
  %v1761 = vxor.u32 %v1760, 2147483648
  %v1762 = vmul.f32 %v1761, 1.442695
  %v1763 = vpow.pop %v1762
  %v1764 = vadd.f32 %v1763, 1.0
  %v1765 = vrcp.pop %v1764
  %v1766 = vmul.f32 1.0, %v1765
  %1768 = vrot.lane.b32.xlu0 %v1757, 64
  %v1769 = vpop.permute.xlu0 %1768
  %v1771 = vmul.f32 %v1766, %v1769
  %1773 = vrot.lane.b32.xlu0 %v1771, 64
  %v1774 = vpop.permute.xlu0 %1773
  %v1776 = vadd.f32 %v1687, %v1774
  %v1777 = vtanh.pop %v1776
  %v1778 = vsub.f32 1.0, %v1766
  %1780 = vrot.lane.b32.xlu0 %v1777, 96
  %v1781 = vpop.permute.xlu0 %1780
  %v1783 = vmul.f32 %v1778, %v1781
  %v1784 = vmul.f32 %v1766, %v1681
  %v1785 = vadd.f32 %v1783, %v1784
  %1787 = vrot.lane.b32.xlu0 %v1785, 96
  %v1788 = vpop.permute.xlu0 %1787
  %1790 = vst.msk [vmem:[#allocation2 + $0x30] sm:$0xff] %vm52, %v1788
  %v1791 = vld [vmem:[#allocation3 + $0x38] sm:$0xff]
  %v1792 = vsel %vm52, %v1788, 0
  %1794 = vmatprep.subr.mxu0 0.0
  %1795 = vmatpush1.msra.mxu0 %v1046
  %1796 = vmatprep.subr.mxu0 0.0
  %1797 = vmatpush1.msra.mxu0 %v1047
  %1798 = vmatprep.subr.mxu0 0.0
  %1799 = vmatpush1.msra.mxu0 %v1048
  %1800 = vmatprep.subr.mxu0 0.0
  %1801 = vmatpush1.msra.mxu0 %v1049
  %1802 = vmatprep.subr.mxu0 0.0
  %1803 = vmatpush1.msra.mxu0 0.0
  %1804 = vmatprep.subr.mxu0 0.0
  %1805 = vmatpush1.msra.mxu0 0.0
  %1806 = vmatprep.subr.mxu0 0.0
  %1807 = vmatpush1.msra.mxu0 0.0
  %1808 = vmatprep.subr.mxu0 0.0
  %1809 = vmatpush1.msra.mxu0 0.0
  %1810 = vmatprep.subr.mxu0 0.0
  %1811 = vmatpush1.msra.mxu0 0.0
  %1812 = vmatprep.subr.mxu0 0.0
  %1813 = vmatpush1.msra.mxu0 0.0
  %1814 = vmatprep.subr.mxu0 0.0
  %1815 = vmatpush1.msra.mxu0 0.0
  %1816 = vmatprep.subr.mxu0 0.0
  %1817 = vmatpush1.msra.mxu0 0.0
  %1818 = vmatprep.subr.mxu0 0.0
  %1819 = vmatpush1.msra.mxu0 0.0
  %1820 = vmatprep.subr.mxu0 0.0
  %1821 = vmatpush1.msra.mxu0 0.0
  %1822 = vmatprep.subr.mxu0 0.0
  %1823 = vmatpush1.msra.mxu0 0.0
  %1824 = vmatprep.subr.mxu0 0.0
  %1825 = vmatpush1.msra.mxu0 0.0
  %1826 = vmatprep.subr.mxu0 0.0
  %1827 = vmatpush1.msra.mxu0 0.0
  %1828 = vmatprep.subr.mxu0 0.0
  %1829 = vmatpush1.msra.mxu0 0.0
  %1830 = vmatprep.subr.mxu0 0.0
  %1831 = vmatpush1.msra.mxu0 0.0
  %1832 = vmatprep.subr.mxu0 0.0
  %1833 = vmatpush1.msra.mxu0 0.0
  %1834 = vmatprep.subr.mxu0 0.0
  %1835 = vmatpush1.msra.mxu0 0.0
  %1836 = vmatprep.subr.mxu0 0.0
  %1837 = vmatpush1.msra.mxu0 0.0
  %1838 = vmatprep.subr.mxu0 0.0
  %1839 = vmatpush1.msra.mxu0 0.0
  %1840 = vmatprep.subr.mxu0 0.0
  %1841 = vmatpush1.msra.mxu0 0.0
  %1842 = vmatprep.subr.mxu0 0.0
  %1843 = vmatpush1.msra.mxu0 0.0
  %1844 = vmatprep.subr.mxu0 0.0
  %1845 = vmatpush1.msra.mxu0 0.0
  %1846 = vmatprep.subr.mxu0 0.0
  %1847 = vmatpush1.msra.mxu0 0.0
  %1848 = vmatprep.subr.mxu0 0.0
  %1849 = vmatpush1.msra.mxu0 0.0
  %1850 = vmatprep.subr.mxu0 0.0
  %1851 = vmatpush1.msra.mxu0 0.0
  %1852 = vmatprep.subr.mxu0 0.0
  %1853 = vmatpush1.msra.mxu0 0.0
  %1854 = vmatprep.subr.mxu0 0.0
  %1855 = vmatpush1.msra.mxu0 0.0
  %1856 = vmatprep.subr.mxu0 0.0
  %1857 = vmatpush1.msra.mxu0 0.0
  %1858 = vmatprep.mubr.f32.mxu0 0.0
  %1859 = vmatmul.mubr.f32.gmra.mrb[0].mxu0 %v1792
  %v1860 = vpop.f32.mrb[0].mxu0
  %v1861 = vadd.f32 %v1055, %v1860
  %v1862 = vpop.f32.mrb[0].mxu0
  %1863 = vdwg.mxu0
  %v1864 = vadd.f32 %v1791, %v1861
  %v1865 = vxor.u32 %v1864, 2147483648
  %v1866 = vmul.f32 %v1865, 1.442695
  %v1867 = vpow.pop %v1866
  %v1868 = vadd.f32 %v1867, 1.0
  %v1869 = vrcp.pop %v1868
  %v1870 = vmul.f32 1.0, %v1869
  %1872 = vrot.lane.b32.xlu0 %v1861, 64
  %v1873 = vpop.permute.xlu0 %1872
  %v1875 = vmul.f32 %v1870, %v1873
  %1877 = vrot.lane.b32.xlu0 %v1875, 64
  %v1878 = vpop.permute.xlu0 %1877
  %v1880 = vadd.f32 %v1791, %v1878
  %v1881 = vtanh.pop %v1880
  %v1882 = vsub.f32 1.0, %v1870
  %1884 = vrot.lane.b32.xlu0 %v1881, 96
  %v1885 = vpop.permute.xlu0 %1884
  %v1887 = vmul.f32 %v1882, %v1885
  %v1888 = vmul.f32 %v1870, %v1785
  %v1889 = vadd.f32 %v1887, %v1888
  %1891 = vrot.lane.b32.xlu0 %v1889, 96
  %v1892 = vpop.permute.xlu0 %1891
  %1894 = vst.msk [vmem:[#allocation2 + $0x38] sm:$0xff] %vm52, %v1892
  %s1895 = scalar_lea.vmem %s11, 8
  %1896 = vst.msk [vmem:[%s1895] sm:$0xff] %vm52, %v1892
  %v1897 = vmax.f32 %v1889, 0.0
  %v1898 = vld [vmem:[%s8] sm:$0xff]
  %v1899 = vld [vmem:[%s8 + $0x8] sm:$0xff]
  %v1900 = vld [vmem:[%s8 + $0x10] sm:$0xff]
  %v1901 = vld [vmem:[%s8 + $0x18] sm:$0xff]
  %v1902 = vld [vmem:[#allocation4] sm:$0x1]
  %v1904 = vlaneseq
  %v1905 = vshrl.u32 %v1904, 7
  %v1906 = vsub.s32 0, %v1905
  %v1907 = vrot.slane %v1902, %v1906
  %1910 = vrot.lane.b32.xlu0 %v1897, 96
  %v1911 = vpop.permute.xlu0 %1910
  %v1912 = vsel %vm52, %v1911, 0
  %1914 = vmatprep.subr.mxu0 0.0
  %1915 = vmatpush1.msra.mxu0 %v1898
  %1916 = vmatprep.subr.mxu0 0.0
  %1917 = vmatpush1.msra.mxu0 %v1899
  %1918 = vmatprep.subr.mxu0 0.0
  %1919 = vmatpush1.msra.mxu0 %v1900
  %1920 = vmatprep.subr.mxu0 0.0
  %1921 = vmatpush1.msra.mxu0 %v1901
  %1922 = vmatprep.subr.mxu0 0.0
  %1923 = vmatpush1.msra.mxu0 0.0
  %1924 = vmatprep.subr.mxu0 0.0
  %1925 = vmatpush1.msra.mxu0 0.0
  %1926 = vmatprep.subr.mxu0 0.0
  %1927 = vmatpush1.msra.mxu0 0.0
  %1928 = vmatprep.subr.mxu0 0.0
  %1929 = vmatpush1.msra.mxu0 0.0
  %1930 = vmatprep.subr.mxu0 0.0
  %1931 = vmatpush1.msra.mxu0 0.0
  %1932 = vmatprep.subr.mxu0 0.0
  %1933 = vmatpush1.msra.mxu0 0.0
  %1934 = vmatprep.subr.mxu0 0.0
  %1935 = vmatpush1.msra.mxu0 0.0
  %1936 = vmatprep.subr.mxu0 0.0
  %1937 = vmatpush1.msra.mxu0 0.0
  %1938 = vmatprep.subr.mxu0 0.0
  %1939 = vmatpush1.msra.mxu0 0.0
  %1940 = vmatprep.subr.mxu0 0.0
  %1941 = vmatpush1.msra.mxu0 0.0
  %1942 = vmatprep.subr.mxu0 0.0
  %1943 = vmatpush1.msra.mxu0 0.0
  %1944 = vmatprep.subr.mxu0 0.0
  %1945 = vmatpush1.msra.mxu0 0.0
  %1946 = vmatprep.subr.mxu0 0.0
  %1947 = vmatpush1.msra.mxu0 0.0
  %1948 = vmatprep.subr.mxu0 0.0
  %1949 = vmatpush1.msra.mxu0 0.0
  %1950 = vmatprep.subr.mxu0 0.0
  %1951 = vmatpush1.msra.mxu0 0.0
  %1952 = vmatprep.subr.mxu0 0.0
  %1953 = vmatpush1.msra.mxu0 0.0
  %1954 = vmatprep.subr.mxu0 0.0
  %1955 = vmatpush1.msra.mxu0 0.0
  %1956 = vmatprep.subr.mxu0 0.0
  %1957 = vmatpush1.msra.mxu0 0.0
  %1958 = vmatprep.subr.mxu0 0.0
  %1959 = vmatpush1.msra.mxu0 0.0
  %1960 = vmatprep.subr.mxu0 0.0
  %1961 = vmatpush1.msra.mxu0 0.0
  %1962 = vmatprep.subr.mxu0 0.0
  %1963 = vmatpush1.msra.mxu0 0.0
  %1964 = vmatprep.subr.mxu0 0.0
  %1965 = vmatpush1.msra.mxu0 0.0
  %1966 = vmatprep.subr.mxu0 0.0
  %1967 = vmatpush1.msra.mxu0 0.0
  %1968 = vmatprep.subr.mxu0 0.0
  %1969 = vmatpush1.msra.mxu0 0.0
  %1970 = vmatprep.subr.mxu0 0.0
  %1971 = vmatpush1.msra.mxu0 0.0
  %1972 = vmatprep.subr.mxu0 0.0
  %1973 = vmatpush1.msra.mxu0 0.0
  %1974 = vmatprep.subr.mxu0 0.0
  %1975 = vmatpush1.msra.mxu0 0.0
  %1976 = vmatprep.subr.mxu0 0.0
  %1977 = vmatpush1.msra.mxu0 0.0
  %1978 = vmatprep.mubr.f32.mxu0 0.0
  %1979 = vmatmul.mubr.f32.gmra.mrb[0].mxu0 %v1912
  %v1980 = vpop.f32.mrb[0].mxu0
  %v1981 = vadd.f32 %v1907, %v1980
  %v1982 = vpop.f32.mrb[0].mxu0
  %1983 = vdwg.mxu0
  %vm1984 = vcmask 7168
  %1985 = vst.msk [vmem:[%s10] sm:$0xff] %vm1984, %v1981
  // Predicated region
  $region42: #{grunet_forward.1} parent=0 // pred_check
    _
  $region43: #{grunet_forward.1} parent=0 // pred_check_branch
    %1987 = sbr.rel (0) target = $region45
  $region44: #{grunet_forward.1} parent=0 // pred_region
    _
  $region45: #{grunet_forward.1} parent=0 // pred_fallthru
    _
  // Predicated region
  $region46: #{grunet_forward.1} parent=0 // pred_check
    _
  $region47: #{grunet_forward.1} parent=0 // pred_check_branch
    %1989 = sbr.rel (0) target = $region49
  $region48: #{grunet_forward.1} parent=0 // pred_region
    _
  $region49: #{grunet_forward.1} parent=0 // pred_fallthru
    _
  // Predicated region
  $region50: #{grunet_forward.1} parent=0 // pred_check
    _
  $region51: #{grunet_forward.1} parent=0 // pred_check_branch
    %1991 = sbr.rel (0) target = $region53
  $region52: #{grunet_forward.1} parent=0 // pred_region
    _
  $region53: #{grunet_forward.1} parent=0 // pred_fallthru
    _
  // Predicated region
  $region54: #{grunet_forward.1} parent=0 // pred_check
    _
  $region55: #{grunet_forward.1} parent=0 // pred_check_branch
    %1993 = sbr.rel (0) target = $region57
  $region56: #{grunet_forward.1} parent=0 // pred_region
    _
  $region57: #{grunet_forward.1} parent=0 // pred_fallthru
    _

</llo_original>
